<compile_context>
chip_gen: v7x
topology: tpu7x:2x2x1
jax: 0.10.0
libtpu: 0.0.40
codegen_flags: <defaults>
</compile_context>

<pallas_src>
import functools

import numpy as np
import jax
import jax.numpy as jnp
from jax.experimental import pallas as pl
from jax.experimental.pallas import tpu as pltpu


# ----------------------------------------------------------------------------
# helpers
# ----------------------------------------------------------------------------
def _round_up(x, m):
    return (x + m - 1) // m * m


# ----------------------------------------------------------------------------
# fused matmul kernels:  out = [relu]( A @ B + bias [+ residual] )
# ----------------------------------------------------------------------------
def _mm_kernel_k1(*refs, relu, has_res):
    # single-K-step path: no accumulator scratch, no pl.when phases
    if has_res:
        a_ref, b_ref, bias_ref, res_ref, o_ref = refs
    else:
        a_ref, b_ref, bias_ref, o_ref = refs
        res_ref = None
    out = jnp.dot(a_ref[...], b_ref[...], preferred_element_type=jnp.float32)
    out = out + bias_ref[...]
    if has_res:
        out = out + res_ref[...].astype(jnp.float32)
    if relu:
        out = jnp.maximum(out, 0.0)
    o_ref[...] = out.astype(o_ref.dtype)


def _mm_kernel_acc(*refs, relu, has_res):
    # multi-K-step path with f32 VMEM accumulator (not exercised in this net)
    if has_res:
        a_ref, b_ref, bias_ref, res_ref, o_ref, acc_ref = refs
    else:
        a_ref, b_ref, bias_ref, o_ref, acc_ref = refs
        res_ref = None
    k = pl.program_id(2)

    @pl.when(k == 0)
    def _():
        acc_ref[...] = jnp.zeros_like(acc_ref)

    acc_ref[...] += jnp.dot(a_ref[...], b_ref[...],
                            preferred_element_type=jnp.float32)

    @pl.when(k == pl.num_programs(2) - 1)
    def _():
        out = acc_ref[...] + bias_ref[...]
        if has_res:
            out = out + res_ref[...].astype(jnp.float32)
        if relu:
            out = jnp.maximum(out, 0.0)
        o_ref[...] = out.astype(o_ref.dtype)


def _pick_tk_fallback(kp):
    for t in range(4096, 0, -128):
        if kp % t == 0:
            return t
    return 128


def pallas_matmul(a, b, bias, *, relu=False, residual=None,
                  out_dtype=jnp.bfloat16):
    """A (M,Ka) @ B (Kp,Np) + bias (+ residual), bf16 operands / f32 accumulation."""
    M, Ka = a.shape
    Kp, Np = b.shape
    assert Kp % 128 == 0 and Np % 128 == 0 and Ka <= Kp

    a = a.astype(jnp.bfloat16)
    if Ka < Kp:
        a = jnp.pad(a, ((0, 0), (0, Kp - Ka)))

    # K tiling: collapse to a single K step whenever the weight tile is VMEM-resident
    # (always true in this net: K <= 4608 -> B tile <= ~4.7 MB bf16).
    TK = Kp if Kp <= 6144 else _pick_tk_fallback(Kp)
    grid_k = Kp // TK

    # M tiling: large tiles for the big-M layers (stem/layer1), sublane-rounded tiles
    # for tiny-M layers; VMEM-guard the (double-buffered) A tile.
    tm_cap = 1024
    while tm_cap > 64 and tm_cap * TK * 2 * 2 > 8 * 1024 * 1024:
        tm_cap //= 2
    TM = min(_round_up(M, 8), tm_cap)
    Mp = _round_up(M, TM)
    if Mp > M:
        a = jnp.pad(a, ((0, Mp - M), (0, 0)))
    grid_m = Mp // TM

    # N tiling: for tiny-M layers prefer one big grid point (grid steps are pure
    # overhead there); otherwise 256-wide tiles whenever possible (v6e/v7x MXU width).
    if M <= 32 and Np <= 512 and grid_k == 1:
        TN = Np
    elif Np % 256 == 0:
        TN = 256
    else:
        TN = 128
    grid_n = Np // TN

    if residual is not None:
        assert residual.shape == (M, Np)
        residual = residual.astype(jnp.bfloat16)
        if Mp > M:
            residual = jnp.pad(residual, ((0, Mp - M), (0, 0)))

    operands = [a, b, bias]
    has_res = residual is not None
    if has_res:
        operands.append(residual)

    if grid_k == 1:
        kernel = functools.partial(_mm_kernel_k1, relu=relu, has_res=has_res)
        grid = (grid_m, grid_n)
        in_specs = [
            pl.BlockSpec((TM, TK), lambda i, j: (i, 0)),
            pl.BlockSpec((TK, TN), lambda i, j: (0, j)),
            pl.BlockSpec((1, TN), lambda i, j: (0, j)),
        ]
        if has_res:
            in_specs.append(pl.BlockSpec((TM, TN), lambda i, j: (i, j)))
        out_specs = pl.BlockSpec((TM, TN), lambda i, j: (i, j))
        scratch = []
        dims = ("parallel", "parallel")
    else:
        kernel = functools.partial(_mm_kernel_acc, relu=relu, has_res=has_res)
        grid = (grid_m, grid_n, grid_k)
        in_specs = [
            pl.BlockSpec((TM, TK), lambda i, j, k: (i, k)),
            pl.BlockSpec((TK, TN), lambda i, j, k: (k, j)),
            pl.BlockSpec((1, TN), lambda i, j, k: (0, j)),
        ]
        if has_res:
            in_specs.append(pl.BlockSpec((TM, TN), lambda i, j, k: (i, j)))
        out_specs = pl.BlockSpec((TM, TN), lambda i, j, k: (i, j))
        scratch = [pltpu.VMEM((TM, TN), jnp.float32)]
        dims = ("parallel", "parallel", "arbitrary")

    out = pl.pallas_call(
        kernel,
        out_shape=jax.ShapeDtypeStruct((Mp, Np), out_dtype),
        grid_spec=pltpu.PrefetchScalarGridSpec(
            num_scalar_prefetch=0,
            grid=grid,
            in_specs=in_specs,
            out_specs=out_specs,
            scratch_shapes=scratch,
        ),
        compiler_params=pltpu.CompilerParams(
            dimension_semantics=dims,
            # explicit on all generations; worst-case tiles here are ~10 MB, which is
            # safe under v7x's 64 MiB physical VMEM as well.
            vmem_limit_bytes=32 * 1024 * 1024,
        ),
    )(*operands)
    return out[:M] if Mp > M else out


# ----------------------------------------------------------------------------
# maxpool 3x3 stride 2 pad 1 (NHWC) — VPU max chain over the 9 shifted views
# ----------------------------------------------------------------------------
def _maxpool_kernel(*refs):
    o_ref = refs[-1]
    m = refs[0][...]
    for r in refs[1:-1]:
        m = jnp.maximum(m, r[...])
    o_ref[...] = m


def pallas_maxpool_3x3_s2(x):
    N, H, W, C = x.shape
    Ho = (H + 2 - 3) // 2 + 1
    Wo = (W + 2 - 3) // 2 + 1
    neg = float(jnp.finfo(x.dtype).min)
    xp = jnp.pad(x, ((0, 0), (1, 1), (1, 1), (0, 0)), constant_values=neg)
    views = [
        xp[:, i:i + 2 * (Ho - 1) + 1:2, j:j + 2 * (Wo - 1) + 1:2, :]
        .reshape(N * Ho, Wo * C)
        for i in range(3) for j in range(3)
    ]
    out = pl.pallas_call(
        _maxpool_kernel,
        out_shape=jax.ShapeDtypeStruct((N * Ho, Wo * C), x.dtype),
    )(*views)
    return out.reshape(N, Ho, Wo, C)


# ----------------------------------------------------------------------------
# fused dec3 (1x1 conv 128->2) + bilinear resize (align_corners=False)
#   out[n,c] = Ah @ (sum_k y[n,:,:,k] Wd[k,c] + b[c]) @ Aw
# implemented as:  T = Ah @ Y_n (H-interp),  Out = T @ G + b_row,
# where Y_n = y[n] reshaped to (H, W*C) and G[w*C+k, c*256+wo] = Wd[k,c]*Aw[w,wo].
# ----------------------------------------------------------------------------
def _bilinear_matrix(in_size, out_size):
    A = np.zeros((out_size, in_size), dtype=np.float32)
    scale = in_size / out_size
    for o in range(out_size):
        src = max((o + 0.5) * scale - 0.5, 0.0)
        i0 = min(int(np.floor(src)), in_size - 1)
        i1 = min(i0 + 1, in_size - 1)
        w1 = src - i0
        A[o, i0] += 1.0 - w1
        A[o, i1] += w1
    return A


def _dec3_resize_kernel(x_ref, ah_ref, g_ref, b_ref, o_ref):
    ah = ah_ref[...]
    g = g_ref[...]
    b = b_ref[...]
    wout = o_ref.shape[3]
    for n in range(x_ref.shape[0]):
        t = jnp.dot(ah, x_ref[n].astype(jnp.float32),
                    preferred_element_type=jnp.float32)          # (Hout, W*C)
        out = jnp.dot(t, g, preferred_element_type=jnp.float32) + b   # (Hout, Cout*Wout)
        for c in range(o_ref.shape[1]):
            o_ref[n, c] = out[:, c * wout:(c + 1) * wout]


def pallas_dec3_resize(y, rp):
    """y: (N,H,W,C) bf16 -> (N,Cout,Hout,Wout) f32."""
    N, H, W, C = y.shape
    assert W * C == rp["g"].shape[0]
    x2 = y.reshape(N, H, W * C)
    Hp = rp["Hp"]
    if Hp > H:
        x2 = jnp.pad(x2, ((0, 0), (0, Hp - H), (0, 0)))
    return pl.pallas_call(
        _dec3_resize_kernel,
        out_shape=jax.ShapeDtypeStruct(
            (N, rp["cout"], rp["hout"], rp["wout"]), jnp.float32),
    )(x2, rp["ah"], rp["g"], rp["b"])


# ----------------------------------------------------------------------------
# conv plumbing (NHWC, channels padded to 128, bf16 activations)
# ----------------------------------------------------------------------------
def _im2col_nhwc(x, kh, kw, stride, pad):
    # K ordering = (kh*kw outer, channel inner), matching _prep_conv's weight layout.
    N, H, W, C = x.shape
    Ho = (H + 2 * pad - kh) // stride + 1
    Wo = (W + 2 * pad - kw) // stride + 1
    xp = jnp.pad(x, ((0, 0), (pad, pad), (pad, pad), (0, 0))) if pad else x
    if kh == 1 and kw == 1:
        p = xp[:, 0:(Ho - 1) * stride + 1:stride, 0:(Wo - 1) * stride + 1:stride, :]
        return p.reshape(N * Ho * Wo, C), Ho, Wo
    views = [
        xp[:, i:i + (Ho - 1) * stride + 1:stride,
              j:j + (Wo - 1) * stride + 1:stride, :]
        for i in range(kh) for j in range(kw)
    ]
    patches = jnp.stack(views, axis=3)          # (N, Ho, Wo, kh*kw, C)
    return patches.reshape(N * Ho * Wo, kh * kw * C), Ho, Wo


def conv2d(x, cp, *, stride, pad, relu, residual=None):
    N = x.shape[0]
    patches, Ho, Wo = _im2col_nhwc(x, cp["kh"], cp["kw"], stride, pad)
    res2d = None if residual is None else residual.reshape(N * Ho * Wo, -1)
    out = pallas_matmul(patches, cp["w"], cp["b"], relu=relu, residual=res2d)
    return out.reshape(N, Ho, Wo, cp["w"].shape[1])


def basic_block(x, bpp, stride):
    out = conv2d(x, bpp["conv1"], stride=stride, pad=1, relu=True)
    if "down" in bpp:
        identity = conv2d(x, bpp["down"], stride=stride, pad=0, relu=False)
    else:
        identity = x
    # conv2 + BN + residual add + ReLU fused in a single matmul epilogue
    return conv2d(out, bpp["conv2"], stride=1, pad=1, relu=True, residual=identity)


# ----------------------------------------------------------------------------
# parameters (deterministic synthetic init, shapes = torchvision resnet18 + decoder)
# ----------------------------------------------------------------------------
def make_params(key):
    key_box = [key]

    def nxt():
        key_box[0], sub = jax.random.split(key_box[0])
        return sub

    def conv_w(cout, cin, k):
        fan = cin * k * k
        return jax.random.normal(nxt(), (cout, cin, k, k), jnp.float32) / np.sqrt(fan)

    def bn(c):
        gamma = 1.0 + 0.1 * jax.random.normal(nxt(), (c,), jnp.float32)
        beta = 0.1 * jax.random.normal(nxt(), (c,), jnp.float32)
        mean = 0.1 * jax.random.normal(nxt(), (c,), jnp.float32)
        var = 0.5 + jax.random.uniform(nxt(), (c,), jnp.float32)
        return (gamma, beta, mean, var)

    def block(cin, cout, stride):
        bp = {
            "conv1_w": conv_w(cout, cin, 3),
            "bn1": bn(cout),
            "conv2_w": conv_w(cout, cout, 3),
            "bn2": bn(cout),
        }
        if stride != 1 or cin != cout:
            bp["down_w"] = conv_w(cout, cin, 1)
            bp["down_bn"] = bn(cout)
        return bp

    p = {
        "conv1_w": conv_w(64, 3, 7),
        "bn1": bn(64),
        "layer1": [block(64, 64, 1), block(64, 64, 1)],
        "layer2": [block(64, 128, 2), block(128, 128, 1)],
        "layer3": [block(128, 256, 2), block(256, 256, 1)],
        "layer4": [block(256, 512, 2), block(512, 512, 1)],
        "dec1_w": conv_w(256, 512, 3),
        "dec1_b": 0.05 * jax.random.normal(nxt(), (256,), jnp.float32),
        "dec2_w": conv_w(128, 256, 3),
        "dec2_b": 0.05 * jax.random.normal(nxt(), (128,), jnp.float32),
        "dec3_w": conv_w(2, 128, 1),
        "dec3_b": 0.05 * jax.random.normal(nxt(), (2,), jnp.float32),
    }
    return p


# ----------------------------------------------------------------------------
# one-time parameter preparation: fold BN, transpose/pad/cast weights to bf16,
# build the fused dec3+resize matrices
# ----------------------------------------------------------------------------
def _fold_bn(w, bn, eps=1e-5):
    gamma, beta, mean, var = bn
    scale = gamma / jnp.sqrt(var + eps)
    return w * scale[:, None, None, None], beta - mean * scale


def _prep_conv(w, bias, cin_pad):
    """(Cout,Cin,kh,kw) f32 -> {'w': (K, CoutP) bf16, 'b': (1, CoutP) f32, ...}."""
    Cout, Cin, kh, kw = w.shape
    cout_p = _round_up(Cout, 128)
    wp = jnp.pad(w, ((0, cout_p - Cout), (0, cin_pad - Cin), (0, 0), (0, 0)))
    wm = wp.transpose(2, 3, 1, 0).reshape(kh * kw * cin_pad, cout_p)
    k_p = _round_up(kh * kw * cin_pad, 128)
    wm = jnp.pad(wm, ((0, k_p - kh * kw * cin_pad), (0, 0)))
    bp = jnp.pad(bias, (0, cout_p - Cout)).reshape(1, cout_p).astype(jnp.float32)
    return {"w": wm.astype(jnp.bfloat16), "b": bp, "kh": kh, "kw": kw, "cout": Cout}


def _prep_block(bp, cin_pad):
    w1, b1 = _fold_bn(bp["conv1_w"], bp["bn1"])
    w2, b2 = _fold_bn(bp["conv2_w"], bp["bn2"])
    out = {
        "conv1": _prep_conv(w1, b1, cin_pad),
        "conv2": _prep_conv(w2, b2, _round_up(w1.shape[0], 128)),
    }
    if "down_w" in bp:
        wd, bd = _fold_bn(bp["down_w"], bp["down_bn"])
        out["down"] = _prep_conv(wd, bd, cin_pad)
    return out


def _prep_dec3_resize(w, bias, H, W, Hout, Wout):
    """dec3 1x1 conv (Cout=2, Cin) + bilinear (H,W)->(Hout,Wout) fused matrices."""
    Cout, Cin = w.shape[0], w.shape[1]
    wd = w[:, :, 0, 0].T                                   # (Cin, Cout)
    ah = jnp.asarray(_bilinear_matrix(H, Hout))            # (Hout, H)
    awm = jnp.asarray(_bilinear_matrix(W, Wout)).T         # (W, Wout)
    Hp = _round_up(H, 8)                                   # sublane minimum only
    ah = jnp.pad(ah, ((0, 0), (0, Hp - H)))                # (Hout, Hp)
    # G[w*Cin + k, c*Wout + o] = Wd[k,c] * Aw[w,o]
    g = (wd[None, :, :, None] * awm[:, None, None, :]).reshape(W * Cin, Cout * Wout)
    b_row = jnp.repeat(bias, Wout).reshape(1, Cout * Wout)
    return {"ah": ah.astype(jnp.float32), "g": g.astype(jnp.float32),
            "b": b_row.astype(jnp.float32), "Hp": Hp,
            "cout": Cout, "hout": Hout, "wout": Wout}


def prepare_params(p, input_hw):
    pp = {}
    w, b = _fold_bn(p["conv1_w"], p["bn1"])
    pp["stem"] = _prep_conv(w, b, cin_pad=3)        # stem input keeps C = 3
    cpad = 128
    for name in ("layer1", "layer2", "layer3", "layer4"):
        blocks = []
        for bp in p[name]:
            blocks.append(_prep_block(bp, cpad))
            cpad = _round_up(bp["conv1_w"].shape[0], 128)
        pp[name] = blocks
    pp["dec1"] = _prep_conv(p["dec1_w"], p["dec1_b"], cin_pad=512)
    pp["dec2"] = _prep_conv(p["dec2_w"], p["dec2_b"], cin_pad=256)
    # decoder spatial size = input / 32 (stem /2, maxpool /2, layers 2-4 /2 each)
    dh, dw = input_hw[0] // 32, input_hw[1] // 32
    pp["dec3_resize"] = _prep_dec3_resize(p["dec3_w"], p["dec3_b"],
                                          H=dh, W=dw, Hout=256, Wout=256)
    return pp


# ----------------------------------------------------------------------------
# UVNet forward
# ----------------------------------------------------------------------------
def uvnet_forward(x_nchw, pp):
    x = jnp.transpose(x_nchw, (0, 2, 3, 1)).astype(jnp.bfloat16)   # NHWC
    # stem: conv1 -> bn1 -> relu -> maxpool
    y = conv2d(x, pp["stem"], stride=2, pad=3, relu=True)
    y = pallas_maxpool_3x3_s2(y)
    # residual layers 1..4
    for name, stride in (("layer1", 1), ("layer2", 2), ("layer3", 2), ("layer4", 2)):
        b0, b1 = pp[name]
        y = basic_block(y, b0, stride)
        y = basic_block(y, b1, 1)
    # decoder: conv3x3 -> relu -> conv3x3 -> relu -> [conv1x1 fused with resize]
    y = conv2d(y, pp["dec1"], stride=1, pad=1, relu=True)
    y = conv2d(y, pp["dec2"], stride=1, pad=1, relu=True)
    # dec3 (1x1, 128->2) + F.interpolate(size=(256,256), bilinear, align_corners=False)
    return pallas_dec3_resize(y, pp["dec3_resize"])


# ----------------------------------------------------------------------------
# main
# ----------------------------------------------------------------------------
if __name__ == "__main__":
    key = jax.random.PRNGKey(0)
    kx, kp = jax.random.split(key)

    # small RGB input (NCHW); 64x64 -> 2x2 at layer4, decoder keeps 2x2, output 256x256
    x = jax.random.normal(kx, (2, 3, 64, 64), jnp.float32)
    params = make_params(kp)
    prepped = prepare_params(params, input_hw=(64, 64))

    out = uvnet_forward(x, prepped)
    out = jax.block_until_ready(out)

    assert out.shape == (2, 2, 256, 256), out.shape
    assert out.dtype == jnp.float32
    assert bool(jnp.all(jnp.isfinite(out)))
    print("KERNEL_OK")
</pallas_src>

<mosaic_0001>
module attributes {stable_mosaic.version = 11 : i64} {
  func.func @_mm_kernel_k1(%arg0: i32, %arg1: i32, %arg2: memref<1024x256xbf16, #tpu.memory_space<vmem>>, %arg3: memref<256x128xbf16, #tpu.memory_space<vmem>>, %arg4: memref<1x128xf32, #tpu.memory_space<vmem>>, %arg5: memref<1024x128xbf16, #tpu.memory_space<vmem>>) attributes {dimension_semantics = [#tpu.dimension_semantics<parallel>, #tpu.dimension_semantics<parallel>], iteration_bounds = array<i64: 2, 1>, scalar_prefetch = 0 : i64, scratch_operands = 0 : i64, tpu.core_type = #tpu.core_type<tc>, window_params = [{transform_indices = @transform_0, window_bounds = array<i64: 1024, 256>}, {transform_indices = @transform_1, window_bounds = array<i64: 256, 128>}, {transform_indices = @transform_2, window_bounds = array<i64: 1, 128>}, {transform_indices = @transform_3, window_bounds = array<i64: 1024, 128>}]} {
    %c0 = arith.constant 0 : index
    %c0_0 = arith.constant 0 : index
    %0 = vector.load %arg2[%c0, %c0_0] : memref<1024x256xbf16, #tpu.memory_space<vmem>>, vector<1024x256xbf16>
    %c0_1 = arith.constant 0 : index
    %c0_2 = arith.constant 0 : index
    %1 = vector.load %arg3[%c0_1, %c0_2] : memref<256x128xbf16, #tpu.memory_space<vmem>>, vector<256x128xbf16>
    %cst = arith.constant dense<0.000000e+00> : vector<1024x128xf32>
    %2 = tpu.matmul %0, %1, %cst {dimension_numbers = #tpu.dot_dimension_numbers<[1], [0], [0], [1], [0, 0, 1, 1], [], []>} : vector<1024x256xbf16>, vector<256x128xbf16>, vector<1024x128xf32> -> vector<1024x128xf32>
    %c0_3 = arith.constant 0 : index
    %c0_4 = arith.constant 0 : index
    %3 = vector.load %arg4[%c0_3, %c0_4] : memref<1x128xf32, #tpu.memory_space<vmem>>, vector<1x128xf32>
    %4 = vector.broadcast %3 : vector<1x128xf32> to vector<1024x128xf32>
    %5 = arith.addf %2, %4 : vector<1024x128xf32>
    %cst_5 = arith.constant 0.000000e+00 : f32
    %6 = vector.broadcast %cst_5 : f32 to vector<1024x128xf32>
    %7 = arith.maximumf %5, %6 : vector<1024x128xf32>
    %8 = arith.truncf %7 : vector<1024x128xf32> to vector<1024x128xbf16>
    %c0_6 = arith.constant 0 : index
    %c0_7 = arith.constant 0 : index
    %9 = vector.load %arg5[%c0_6, %c0_7] : memref<1024x128xbf16, #tpu.memory_space<vmem>>, vector<1024x128xbf16>
    tpu.vector_store %arg5[%c0_6, %c0_7], %8 {strides = array<i32>} : memref<1024x128xbf16, #tpu.memory_space<vmem>>, vector<1024x128xbf16>,
    return
  }
  func.func @transform_0(%arg0: i32, %arg1: i32) -> (i32, i32) {
    %c0_i32 = arith.constant 0 : i32
    %c0_i32_0 = arith.constant 0 : i32
    return %arg0, %c0_i32 : i32, i32
  }
  func.func @transform_1(%arg0: i32, %arg1: i32) -> (i32, i32) {
    %c0_i32 = arith.constant 0 : i32
    %c0_i32_0 = arith.constant 0 : i32
    return %c0_i32, %arg1 : i32, i32
  }
  func.func @transform_2(%arg0: i32, %arg1: i32) -> (i32, i32) {
    %c0_i32 = arith.constant 0 : i32
    %c0_i32_0 = arith.constant 0 : i32
    return %c0_i32, %arg1 : i32, i32
  }
  func.func @transform_3(%arg0: i32, %arg1: i32) -> (i32, i32) {
    %c0_i32 = arith.constant 0 : i32
    return %arg0, %arg1 : i32, i32
  }
}

</mosaic_0001>

<llo_original>
// kernel: tpu_custom_call.1
$region0: #{tpu_custom_call.1}
  #allocation0 [shape = 'u32[]', space=smem, size = 0x4, offset = 0x4, fixed_abs, tag = 'smem constant byte address 0x4 - core index']
  #allocation1 [shape = 'u32[144,128]{1,0:T(1,128)}', space=vmem, size = 0x12000, scoped, tag = 'internal scratch']
  %s0 = inlined_call_operand.hbm [shape: bf16[2048,256], index: 0, kind: input, shape index: {}]
  %s1 = inlined_call_operand.hbm [shape: bf16[256,128], index: 1, kind: input, shape index: {}]
  %s2 = inlined_call_operand.vmem [shape: f32[1,128], index: 2, kind: input, shape index: {}]
  %s3 = inlined_call_operand.hbm [shape: bf16[2048,128], index: 3, kind: output, shape index: {}]
  %s4 = sld [smem:[#allocation0]]
  $region53: #{tpu_custom_call.1} parent=0
    _
  %s6 = ssub.s32 1, %s4
  %s7 = scalar_select 0, %s6, %s4
  $region1: #{tpu_custom_call.1} parent=0
    #allocation2 [shape = 'u8[1048576]{0}', space=vmem, size = 0x100000, scoped, tag = 'input window, operand 0']
    #allocation3 [shape = 's32[2]{0}', space=sflag, size = 0x8, scoped, tag = 'scoped memory for tpu_custom_call.1']
    #allocation4 [shape = 's32[2]{0}', space=sflag, size = 0x8, scoped, tag = 'scoped memory for tpu_custom_call.1']
    #allocation5 [shape = 'u8[65536]{0}', space=vmem, size = 0x10000, scoped, tag = 'input window, operand 1, single buffered']
    #allocation6 [shape = 's32[1]{0}', space=sflag, size = 0x4, scoped, tag = 'scoped memory for tpu_custom_call.1']
    #allocation7 [shape = 'u8[524288]{0}', space=vmem, size = 0x80000, scoped, tag = 'output window, operand 0']
    %8 = vsyncpa [#allocation3], 0
    %s9 = scalar_lea.sflag [#allocation3], 1
    %10 = vsyncpa %s9, 0
    %11 = vsyncpa [#allocation6], 0
    %12 = vsyncpa [#allocation4], 0
    %s13 = scalar_lea.sflag [#allocation4], 1
    %14 = vsyncpa %s13, 0
    loop: start=0, step=1, limit=4
    $region2: #{tpu_custom_call.1} parent=1 // loop_pre_header
      _
    $region3: #{tpu_custom_call.1} parent=1 // loop_header
      %s16 = sphi 0, %s20
      %p17 = scmp.ge.s32.totalorder %s16, 4
      %s23 = sphi 0, %s35
      %s24 = sphi 0, %s31
      %s25 = sphi 0, %s23
      %s26 = sphi 0, %s24
      %s27 = sphi 0, %s25
      %s28 = sphi 0, %s26
      %s38 = sphi 0, %s40
      %s41 = sphi 0, %s38
      %s42 = sphi 0, %s41
      %s58 = sphi 0, %s42
      %s64 = sphi 0, %s66
      %s67 = sphi 0, %s64
      %s68 = sphi 0, %s67
      %s84 = sphi 0, %s68
      %s90 = sphi 0, %s92
      %s93 = sphi 0, %s90
      %s94 = sphi 0, %s93
      %s110 = sphi 0, %s94
      %s118 = sphi 0, %s120
      %s121 = sphi 0, %s118
      %s122 = sphi 0, %s121
      %s138 = sphi 0, %s122
    $region4: #{tpu_custom_call.1} parent=1 // loop_header_branch
      %19 = sbr.rel (%p17) target = $region8
    $region5: #{tpu_custom_call.1} parent=1 // loop_body
      %s21 = ssub.s32 %s16, 1
      %s22 = ssub.s32 %s16, 2
      %s29 = sadd.s32 1, %s24
      %p30 = scmp.ge.s32.totalorder %s29, 1
      %s31 = scalar_select %p30, 0, %s29
      %s32 = sadd.s32 1, %s23
      %s33 = scalar_select %p30, %s32, %s23
      %p34 = scmp.ge.s32.totalorder %s33, 2
      %s35 = scalar_select %p34, 0, %s33
      %s36 = ssub.s32 %s23, %s35
      %p37 = scmp.eq.s32.totalorder %s36, 0
      %s39 = sadd.s32 %s38, 1
      %s40 = scalar_select %p37, %s38, %s39
      %p43 = pneg %p37
      %p44 = scmp.eq.s32.totalorder %s16, 1
      %p45 = por %p43, %p44
      %p46 = scmp.ne.s32.totalorder %s38, %s41
      %p47 = scmp.eq.s32.totalorder %s16, 0
      %p48 = por %p46, %p47
      %p49 = scmp.ne.s32.totalorder %s38, %s41
      %p50 = scmp.eq.s32.totalorder %s21, 1
      %p51 = por %p49, %p50
      %p52 = scmp.ne.s32.totalorder %s41, %s42
      %p53 = scmp.eq.s32.totalorder %s21, 0
      %p54 = por %p52, %p53
      %p55 = scmp.ne.s32.totalorder %s41, %s42
      %p56 = scmp.eq.s32.totalorder %s22, 1
      %p57 = por %p55, %p56
      %p59 = scmp.ne.s32.totalorder %s42, %s58
      %p60 = scmp.eq.s32.totalorder %s22, 0
      %p61 = por %p59, %p60
      %s62 = ssub.s32 %s24, %s31
      %p63 = scmp.eq.s32.totalorder %s62, 0
      %s65 = sadd.s32 %s64, 1
      %s66 = scalar_select %p63, %s64, %s65
      %p69 = pneg %p63
      %p70 = scmp.eq.s32.totalorder %s16, 1
      %p71 = por %p69, %p70
      %p72 = scmp.ne.s32.totalorder %s64, %s67
      %p73 = scmp.eq.s32.totalorder %s16, 0
      %p74 = por %p72, %p73
      %p75 = scmp.ne.s32.totalorder %s64, %s67
      %p76 = scmp.eq.s32.totalorder %s21, 1
      %p77 = por %p75, %p76
      %p78 = scmp.ne.s32.totalorder %s67, %s68
      %p79 = scmp.eq.s32.totalorder %s21, 0
      %p80 = por %p78, %p79
      %p81 = scmp.ne.s32.totalorder %s67, %s68
      %p82 = scmp.eq.s32.totalorder %s22, 1
      %p83 = por %p81, %p82
      %p85 = scmp.ne.s32.totalorder %s68, %s84
      %p86 = scmp.eq.s32.totalorder %s22, 0
      %p87 = por %p85, %p86
      %s88 = ssub.s32 %s24, %s31
      %p89 = scmp.eq.s32.totalorder %s88, 0
      %s91 = sadd.s32 %s90, 1
      %s92 = scalar_select %p89, %s90, %s91
      %p95 = pneg %p89
      %p96 = scmp.eq.s32.totalorder %s16, 1
      %p97 = por %p95, %p96
      %p98 = scmp.ne.s32.totalorder %s90, %s93
      %p99 = scmp.eq.s32.totalorder %s16, 0
      %p100 = por %p98, %p99
      %p101 = scmp.ne.s32.totalorder %s90, %s93
      %p102 = scmp.eq.s32.totalorder %s21, 1
      %p103 = por %p101, %p102
      %p104 = scmp.ne.s32.totalorder %s93, %s94
      %p105 = scmp.eq.s32.totalorder %s21, 0
      %p106 = por %p104, %p105
      %p107 = scmp.ne.s32.totalorder %s93, %s94
      %p108 = scmp.eq.s32.totalorder %s22, 1
      %p109 = por %p107, %p108
      %p111 = scmp.ne.s32.totalorder %s94, %s110
      %p112 = scmp.eq.s32.totalorder %s22, 0
      %p113 = por %p111, %p112
      %s114 = ssub.s32 %s23, %s35
      %s115 = ssub.s32 %s24, %s31
      %s116 = sor.u32 %s114, %s115
      %p117 = scmp.eq.s32.totalorder %s116, 0
      %s119 = sadd.s32 %s118, 1
      %s120 = scalar_select %p117, %s118, %s119
      %p123 = pneg %p117
      %p124 = scmp.eq.s32.totalorder %s16, 1
      %p125 = por %p123, %p124
      %p126 = scmp.ne.s32.totalorder %s118, %s121
      %p127 = scmp.eq.s32.totalorder %s16, 0
      %p128 = por %p126, %p127
      %p129 = scmp.ne.s32.totalorder %s118, %s121
      %p130 = scmp.eq.s32.totalorder %s21, 1
      %p131 = por %p129, %p130
      %p132 = scmp.ne.s32.totalorder %s121, %s122
      %p133 = scmp.eq.s32.totalorder %s21, 0
      %p134 = por %p132, %p133
      %p135 = scmp.ne.s32.totalorder %s121, %s122
      %p136 = scmp.eq.s32.totalorder %s22, 1
      %p137 = por %p135, %p136
      %p139 = scmp.ne.s32.totalorder %s122, %s138
      %p140 = scmp.eq.s32.totalorder %s22, 0
      %p141 = por %p139, %p140
      %p142 = scmp.le.s32.totalorder 1, %s16
      %p143 = scmp.lt.s32.totalorder %s16, 3
      %p144 = pnand %p142, %p143
      %p145 = pneg %p144
      // Predicated region
      $region9: #{tpu_custom_call.1} parent=5 // pred_check
        _
      $region10: #{tpu_custom_call.1} parent=5 // pred_check_branch
        %147 = sbr.rel (%p144) target = $region12
      $region11: #{tpu_custom_call.1} parent=5 // pred_region
        %s148 = ssub.s32 %s16, 1
        // Predicated region
        $region13: #{tpu_custom_call.1} parent=11 // pred_check
          %p149 = pneg %p80
        $region14: #{tpu_custom_call.1} parent=11 // pred_check_branch
          %151 = sbr.rel (%p149) target = $region16
        $region15: #{tpu_custom_call.1} parent=11 // pred_region
          %s153 = ssub.s32 2048, 2048
          %154 = vsyncadd [#allocation6], %s153
          %s155 = smul.addr %s26, 64
          %s156 = scalar_lea.hbm %s1, %s155
          %s157 = sshll.u32 [#allocation5], 4
          %s158 = int_to_ptr.vmem [resolvable:$true] %s157
          %163 = dma.hbm_to_vmem [thread:$0]  %s156, 2048, %s158, [#allocation6], 64, 64, 4
        $region16: #{tpu_custom_call.1} parent=11 // pred_fallthru
          _
        // Predicated region
        $region17: #{tpu_custom_call.1} parent=11 // pred_check
          %p164 = pneg %p106
        $region18: #{tpu_custom_call.1} parent=11 // pred_check_branch
          %166 = sbr.rel (%p164) target = $region20
        $region19: #{tpu_custom_call.1} parent=11 // pred_region
          %p167 = scmp.lt.s32.totalorder %s26, 0
          %s168 = scalar_select %p167, %s26, 0
          %s169 = scalar_lea.vmem %s2, %s168
        $region20: #{tpu_custom_call.1} parent=11 // pred_fallthru
          _
      $region12: #{tpu_custom_call.1} parent=5 // pred_fallthru
        _
      %p170 = scmp.lt.s32.totalorder %s16, 2
      // Predicated region
      $region21: #{tpu_custom_call.1} parent=5 // pred_check
        %p171 = pneg %p170
      $region22: #{tpu_custom_call.1} parent=5 // pred_check_branch
        %173 = sbr.rel (%p171) target = $region24
      $region23: #{tpu_custom_call.1} parent=5 // pred_region
        // Predicated region
        $region25: #{tpu_custom_call.1} parent=23 // pred_check
          %p174 = pneg %p48
        $region26: #{tpu_custom_call.1} parent=23 // pred_check_branch
          %176 = sbr.rel (%p174) target = $region28
        $region27: #{tpu_custom_call.1} parent=23 // pred_region
          %s177 = sand.u32 %s38, 1
          %s178 = scalar_lea.sflag [#allocation3], %s177
          %s179 = sand.u32 %s38, 1
          %s180 = smul.addr %s179, 1024
          %s181 = scalar_lea.vmem [#allocation2], %s180
          %s182 = smul.u32 128, %s23
          %s184 = ssub.s32 16384, 16384
          %185 = vsyncadd %s178, %s184
          %s186 = smul.addr %s182, 2
          %s187 = smul.addr %s186, 64
          %s188 = scalar_lea.hbm %s0, %s187
          %s189 = sshll.u32 %s181, 4
          %s190 = int_to_ptr.vmem [resolvable:$true] %s189
          %195 = dma.hbm_to_vmem [thread:$0]  %s188, 16384, %s190, %s178, 128, 128, 8
        $region28: #{tpu_custom_call.1} parent=23 // pred_fallthru
          _
      $region24: #{tpu_custom_call.1} parent=5 // pred_fallthru
        _
      %p196 = scmp.le.s32.totalorder 1, %s16
      %p197 = scmp.lt.s32.totalorder %s16, 3
      %p198 = pnand %p196, %p197
      %p199 = pneg %p198
      // Predicated region
      $region29: #{tpu_custom_call.1} parent=5 // pred_check
        _
      $region30: #{tpu_custom_call.1} parent=5 // pred_check_branch
        %201 = sbr.rel (%p198) target = $region32
      $region31: #{tpu_custom_call.1} parent=5 // pred_region
        %s202 = ssub.s32 %s16, 1
        %s203 = sand.u32 %s41, 1
        %s204 = scalar_lea.sflag [#allocation3], %s203
        %s205 = sand.u32 %s41, 1
        %s206 = smul.addr %s205, 1024
        %s207 = scalar_lea.vmem [#allocation2], %s206
        // Predicated region
        $region33: #{tpu_custom_call.1} parent=31 // pred_check
          %p208 = pneg %p54
        $region34: #{tpu_custom_call.1} parent=31 // pred_check_branch
          %210 = sbr.rel (%p208) target = $region36
        $region35: #{tpu_custom_call.1} parent=31 // pred_region
          %211 = dma.done %s204, 16384
        $region36: #{tpu_custom_call.1} parent=31 // pred_fallthru
          _
        // Predicated region
        $region37: #{tpu_custom_call.1} parent=31 // pred_check
          %p212 = pneg %p80
        $region38: #{tpu_custom_call.1} parent=31 // pred_check_branch
          %214 = sbr.rel (%p212) target = $region40
        $region39: #{tpu_custom_call.1} parent=31 // pred_region
          %215 = dma.done [#allocation6], 2048
        $region40: #{tpu_custom_call.1} parent=31 // pred_fallthru
          _
        %s216 = sand.u32 %s41, 1
        %s217 = scalar_lea.sflag [#allocation3], %s216
        %s218 = sand.u32 %s41, 1
        %s219 = smul.addr %s218, 1024
        %s220 = scalar_lea.vmem [#allocation2], %s219
        %p221 = pneg %p54
        %p222 = pneg %p51
        %p223 = pneg %p80
        %p224 = pneg %p77
        %p225 = scmp.lt.s32.totalorder %s26, 0
        %s226 = scalar_select %p225, %s26, 0
        %s227 = scalar_lea.vmem %s2, %s226
        %p228 = pneg %p106
        %p229 = pneg %p103
        %p230 = pneg %p134
        %p231 = pneg %p131
        %s232 = sand.u32 %s121, 1
        %s233 = scalar_lea.sflag [#allocation4], %s232
        %s234 = sand.u32 %s121, 1
        %s235 = smul.addr %s234, 512
        %s236 = scalar_lea.vmem [#allocation7], %s235
        %s237 = smul.u32 128, %s25
        %p238 = scmp.lt.s32.totalorder %s26, 0
        %s239 = scalar_select %p238, %s26, 0
        %s240 = scalar_lea.vmem %s2, %s239
        %s241 = smul.u32 128, %s25
        %v243 = vld [vmem:[%s207] sm:$0xff]
        %v244 = vld [vmem:[%s207 + $0x8] sm:$0xff]
        %v245 = vld [vmem:[%s207 + $0x10] sm:$0xff]
        %v246 = vld [vmem:[%s207 + $0x18] sm:$0xff]
        %v247 = vld [vmem:[%s207 + $0x20] sm:$0xff]
        %v248 = vld [vmem:[%s207 + $0x28] sm:$0xff]
        %v249 = vld [vmem:[%s207 + $0x30] sm:$0xff]
        %v250 = vld [vmem:[%s207 + $0x38] sm:$0xff]
        %v251 = vld [vmem:[%s207 + $0x40] sm:$0xff]
        %v252 = vld [vmem:[%s207 + $0x48] sm:$0xff]
        %v253 = vld [vmem:[%s207 + $0x50] sm:$0xff]
        %v254 = vld [vmem:[%s207 + $0x58] sm:$0xff]
        %v255 = vld [vmem:[%s207 + $0x60] sm:$0xff]
        %v256 = vld [vmem:[%s207 + $0x68] sm:$0xff]
        %v257 = vld [vmem:[%s207 + $0x70] sm:$0xff]
        %v258 = vld [vmem:[%s207 + $0x78] sm:$0xff]
        %v259 = vld [vmem:[%s207 + $0x80] sm:$0xff]
        %v260 = vld [vmem:[%s207 + $0x88] sm:$0xff]
        %v261 = vld [vmem:[%s207 + $0x90] sm:$0xff]
        %v262 = vld [vmem:[%s207 + $0x98] sm:$0xff]
        %v263 = vld [vmem:[%s207 + $0xa0] sm:$0xff]
        %v264 = vld [vmem:[%s207 + $0xa8] sm:$0xff]
        %v265 = vld [vmem:[%s207 + $0xb0] sm:$0xff]
        %v266 = vld [vmem:[%s207 + $0xb8] sm:$0xff]
        %v267 = vld [vmem:[%s207 + $0xc0] sm:$0xff]
        %v268 = vld [vmem:[%s207 + $0xc8] sm:$0xff]
        %v269 = vld [vmem:[%s207 + $0xd0] sm:$0xff]
        %v270 = vld [vmem:[%s207 + $0xd8] sm:$0xff]
        %v271 = vld [vmem:[%s207 + $0xe0] sm:$0xff]
        %v272 = vld [vmem:[%s207 + $0xe8] sm:$0xff]
        %v273 = vld [vmem:[%s207 + $0xf0] sm:$0xff]
        %v274 = vld [vmem:[%s207 + $0xf8] sm:$0xff]
        %v275 = vld [vmem:[%s207 + $0x100] sm:$0xff]
        %v276 = vld [vmem:[%s207 + $0x108] sm:$0xff]
        %v277 = vld [vmem:[%s207 + $0x110] sm:$0xff]
        %v278 = vld [vmem:[%s207 + $0x118] sm:$0xff]
        %v279 = vld [vmem:[%s207 + $0x120] sm:$0xff]
        %v280 = vld [vmem:[%s207 + $0x128] sm:$0xff]
        %v281 = vld [vmem:[%s207 + $0x130] sm:$0xff]
        %v282 = vld [vmem:[%s207 + $0x138] sm:$0xff]
        %v283 = vld [vmem:[%s207 + $0x140] sm:$0xff]
        %v284 = vld [vmem:[%s207 + $0x148] sm:$0xff]
        %v285 = vld [vmem:[%s207 + $0x150] sm:$0xff]
        %v286 = vld [vmem:[%s207 + $0x158] sm:$0xff]
        %v287 = vld [vmem:[%s207 + $0x160] sm:$0xff]
        %v288 = vld [vmem:[%s207 + $0x168] sm:$0xff]
        %v289 = vld [vmem:[%s207 + $0x170] sm:$0xff]
        %v290 = vld [vmem:[%s207 + $0x178] sm:$0xff]
        %v291 = vld [vmem:[%s207 + $0x180] sm:$0xff]
        %v292 = vld [vmem:[%s207 + $0x188] sm:$0xff]
        %v293 = vld [vmem:[%s207 + $0x190] sm:$0xff]
        %v294 = vld [vmem:[%s207 + $0x198] sm:$0xff]
        %v295 = vld [vmem:[%s207 + $0x1a0] sm:$0xff]
        %v296 = vld [vmem:[%s207 + $0x1a8] sm:$0xff]
        %v297 = vld [vmem:[%s207 + $0x1b0] sm:$0xff]
        %v298 = vld [vmem:[%s207 + $0x1b8] sm:$0xff]
        %v299 = vld [vmem:[%s207 + $0x1c0] sm:$0xff]
        %v300 = vld [vmem:[%s207 + $0x1c8] sm:$0xff]
        %v301 = vld [vmem:[%s207 + $0x1d0] sm:$0xff]
        %v302 = vld [vmem:[%s207 + $0x1d8] sm:$0xff]
        %v303 = vld [vmem:[%s207 + $0x1e0] sm:$0xff]
        %v304 = vld [vmem:[%s207 + $0x1e8] sm:$0xff]
        %v305 = vld [vmem:[%s207 + $0x1f0] sm:$0xff]
        %v306 = vld [vmem:[%s207 + $0x1f8] sm:$0xff]
        %v307 = vld [vmem:[%s207 + $0x200] sm:$0xff]
        %v308 = vld [vmem:[%s207 + $0x208] sm:$0xff]
        %v309 = vld [vmem:[%s207 + $0x210] sm:$0xff]
        %v310 = vld [vmem:[%s207 + $0x218] sm:$0xff]
        %v311 = vld [vmem:[%s207 + $0x220] sm:$0xff]
        %v312 = vld [vmem:[%s207 + $0x228] sm:$0xff]
        %v313 = vld [vmem:[%s207 + $0x230] sm:$0xff]
        %v314 = vld [vmem:[%s207 + $0x238] sm:$0xff]
        %v315 = vld [vmem:[%s207 + $0x240] sm:$0xff]
        %v316 = vld [vmem:[%s207 + $0x248] sm:$0xff]
        %v317 = vld [vmem:[%s207 + $0x250] sm:$0xff]
        %v318 = vld [vmem:[%s207 + $0x258] sm:$0xff]
        %v319 = vld [vmem:[%s207 + $0x260] sm:$0xff]
        %v320 = vld [vmem:[%s207 + $0x268] sm:$0xff]
        %v321 = vld [vmem:[%s207 + $0x270] sm:$0xff]
        %v322 = vld [vmem:[%s207 + $0x278] sm:$0xff]
        %v323 = vld [vmem:[%s207 + $0x280] sm:$0xff]
        %v324 = vld [vmem:[%s207 + $0x288] sm:$0xff]
        %v325 = vld [vmem:[%s207 + $0x290] sm:$0xff]
        %v326 = vld [vmem:[%s207 + $0x298] sm:$0xff]
        %v327 = vld [vmem:[%s207 + $0x2a0] sm:$0xff]
        %v328 = vld [vmem:[%s207 + $0x2a8] sm:$0xff]
        %v329 = vld [vmem:[%s207 + $0x2b0] sm:$0xff]
        %v330 = vld [vmem:[%s207 + $0x2b8] sm:$0xff]
        %v331 = vld [vmem:[%s207 + $0x2c0] sm:$0xff]
        %v332 = vld [vmem:[%s207 + $0x2c8] sm:$0xff]
        %v333 = vld [vmem:[%s207 + $0x2d0] sm:$0xff]
        %v334 = vld [vmem:[%s207 + $0x2d8] sm:$0xff]
        %v335 = vld [vmem:[%s207 + $0x2e0] sm:$0xff]
        %v336 = vld [vmem:[%s207 + $0x2e8] sm:$0xff]
        %v337 = vld [vmem:[%s207 + $0x2f0] sm:$0xff]
        %v338 = vld [vmem:[%s207 + $0x2f8] sm:$0xff]
        %v339 = vld [vmem:[%s207 + $0x300] sm:$0xff]
        %v340 = vld [vmem:[%s207 + $0x308] sm:$0xff]
        %v341 = vld [vmem:[%s207 + $0x310] sm:$0xff]
        %v342 = vld [vmem:[%s207 + $0x318] sm:$0xff]
        %v343 = vld [vmem:[%s207 + $0x320] sm:$0xff]
        %v344 = vld [vmem:[%s207 + $0x328] sm:$0xff]
        %v345 = vld [vmem:[%s207 + $0x330] sm:$0xff]
        %v346 = vld [vmem:[%s207 + $0x338] sm:$0xff]
        %v347 = vld [vmem:[%s207 + $0x340] sm:$0xff]
        %v348 = vld [vmem:[%s207 + $0x348] sm:$0xff]
        %v349 = vld [vmem:[%s207 + $0x350] sm:$0xff]
        %v350 = vld [vmem:[%s207 + $0x358] sm:$0xff]
        %v351 = vld [vmem:[%s207 + $0x360] sm:$0xff]
        %v352 = vld [vmem:[%s207 + $0x368] sm:$0xff]
        %v353 = vld [vmem:[%s207 + $0x370] sm:$0xff]
        %v354 = vld [vmem:[%s207 + $0x378] sm:$0xff]
        %v355 = vld [vmem:[%s207 + $0x380] sm:$0xff]
        %v356 = vld [vmem:[%s207 + $0x388] sm:$0xff]
        %v357 = vld [vmem:[%s207 + $0x390] sm:$0xff]
        %v358 = vld [vmem:[%s207 + $0x398] sm:$0xff]
        %v359 = vld [vmem:[%s207 + $0x3a0] sm:$0xff]
        %v360 = vld [vmem:[%s207 + $0x3a8] sm:$0xff]
        %v361 = vld [vmem:[%s207 + $0x3b0] sm:$0xff]
        %v362 = vld [vmem:[%s207 + $0x3b8] sm:$0xff]
        %v363 = vld [vmem:[%s207 + $0x3c0] sm:$0xff]
        %v364 = vld [vmem:[%s207 + $0x3c8] sm:$0xff]
        %v365 = vld [vmem:[%s207 + $0x3d0] sm:$0xff]
        %v366 = vld [vmem:[%s207 + $0x3d8] sm:$0xff]
        %v367 = vld [vmem:[%s207 + $0x3e0] sm:$0xff]
        %v368 = vld [vmem:[%s207 + $0x3e8] sm:$0xff]
        %v369 = vld [vmem:[%s207 + $0x3f0] sm:$0xff]
        %v370 = vld [vmem:[%s207 + $0x3f8] sm:$0xff]
        %v371 = vld [vmem:[#allocation5] sm:$0xf]
        %v372 = vld [vmem:[#allocation5 + $0x4] sm:$0xf]
        %v373 = vld [vmem:[#allocation5 + $0x8] sm:$0xf]
        %v374 = vld [vmem:[#allocation5 + $0xc] sm:$0xf]
        %v375 = vld [vmem:[#allocation5 + $0x10] sm:$0xf]
        %v376 = vld [vmem:[#allocation5 + $0x14] sm:$0xf]
        %v377 = vld [vmem:[#allocation5 + $0x18] sm:$0xf]
        %v378 = vld [vmem:[#allocation5 + $0x1c] sm:$0xf]
        %v379 = vld [vmem:[#allocation5 + $0x20] sm:$0xf]
        %v380 = vld [vmem:[#allocation5 + $0x24] sm:$0xf]
        %v381 = vld [vmem:[#allocation5 + $0x28] sm:$0xf]
        %v382 = vld [vmem:[#allocation5 + $0x2c] sm:$0xf]
        %v383 = vld [vmem:[#allocation5 + $0x30] sm:$0xf]
        %v384 = vld [vmem:[#allocation5 + $0x34] sm:$0xf]
        %v385 = vld [vmem:[#allocation5 + $0x38] sm:$0xf]
        %v386 = vld [vmem:[#allocation5 + $0x3c] sm:$0xf]
        %v387 = vld [vmem:[#allocation5 + $0x40] sm:$0xf]
        %v388 = vld [vmem:[#allocation5 + $0x44] sm:$0xf]
        %v389 = vld [vmem:[#allocation5 + $0x48] sm:$0xf]
        %v390 = vld [vmem:[#allocation5 + $0x4c] sm:$0xf]
        %v391 = vld [vmem:[#allocation5 + $0x50] sm:$0xf]
        %v392 = vld [vmem:[#allocation5 + $0x54] sm:$0xf]
        %v393 = vld [vmem:[#allocation5 + $0x58] sm:$0xf]
        %v394 = vld [vmem:[#allocation5 + $0x5c] sm:$0xf]
        %v395 = vld [vmem:[#allocation5 + $0x60] sm:$0xf]
        %v396 = vld [vmem:[#allocation5 + $0x64] sm:$0xf]
        %v397 = vld [vmem:[#allocation5 + $0x68] sm:$0xf]
        %v398 = vld [vmem:[#allocation5 + $0x6c] sm:$0xf]
        %v399 = vld [vmem:[#allocation5 + $0x70] sm:$0xf]
        %v400 = vld [vmem:[#allocation5 + $0x74] sm:$0xf]
        %v401 = vld [vmem:[#allocation5 + $0x78] sm:$0xf]
        %v402 = vld [vmem:[#allocation5 + $0x7c] sm:$0xf]
        %v403 = vld [vmem:[%s240] sm:$0x1]
        %v405 = vlaneseq
        %v406 = vshrl.u32 %v405, 7
        %v407 = vsub.s32 0, %v406
        %v408 = vrot.slane %v403, %v407
        %v538 = vunpack.c.l.b16 %v243
        %v539 = vunpack.c.h.b16 %v243
        %v540 = vunpack.c.l.b16 %v244
        %v541 = vunpack.c.h.b16 %v244
        %v542 = vunpack.c.l.b16 %v245
        %v543 = vunpack.c.h.b16 %v245
        %v544 = vunpack.c.l.b16 %v246
        %v545 = vunpack.c.h.b16 %v246
        %v546 = vunpack.c.l.b16 %v247
        %v547 = vunpack.c.h.b16 %v247
        %v548 = vunpack.c.l.b16 %v248
        %v549 = vunpack.c.h.b16 %v248
        %v550 = vunpack.c.l.b16 %v249
        %v551 = vunpack.c.h.b16 %v249
        %v552 = vunpack.c.l.b16 %v250
        %v553 = vunpack.c.h.b16 %v250
        %v554 = vunpack.c.l.b16 %v251
        %v555 = vunpack.c.h.b16 %v251
        %v556 = vunpack.c.l.b16 %v252
        %v557 = vunpack.c.h.b16 %v252
        %v558 = vunpack.c.l.b16 %v253
        %v559 = vunpack.c.h.b16 %v253
        %v560 = vunpack.c.l.b16 %v254
        %v561 = vunpack.c.h.b16 %v254
        %v562 = vunpack.c.l.b16 %v255
        %v563 = vunpack.c.h.b16 %v255
        %v564 = vunpack.c.l.b16 %v256
        %v565 = vunpack.c.h.b16 %v256
        %v566 = vunpack.c.l.b16 %v257
        %v567 = vunpack.c.h.b16 %v257
        %v568 = vunpack.c.l.b16 %v258
        %v569 = vunpack.c.h.b16 %v258
        %v570 = vunpack.c.l.b16 %v259
        %v571 = vunpack.c.h.b16 %v259
        %v572 = vunpack.c.l.b16 %v260
        %v573 = vunpack.c.h.b16 %v260
        %v574 = vunpack.c.l.b16 %v261
        %v575 = vunpack.c.h.b16 %v261
        %v576 = vunpack.c.l.b16 %v262
        %v577 = vunpack.c.h.b16 %v262
        %v578 = vunpack.c.l.b16 %v263
        %v579 = vunpack.c.h.b16 %v263
        %v580 = vunpack.c.l.b16 %v264
        %v581 = vunpack.c.h.b16 %v264
        %v582 = vunpack.c.l.b16 %v265
        %v583 = vunpack.c.h.b16 %v265
        %v584 = vunpack.c.l.b16 %v266
        %v585 = vunpack.c.h.b16 %v266
        %v586 = vunpack.c.l.b16 %v267
        %v587 = vunpack.c.h.b16 %v267
        %v588 = vunpack.c.l.b16 %v268
        %v589 = vunpack.c.h.b16 %v268
        %v590 = vunpack.c.l.b16 %v269
        %v591 = vunpack.c.h.b16 %v269
        %v592 = vunpack.c.l.b16 %v270
        %v593 = vunpack.c.h.b16 %v270
        %v594 = vunpack.c.l.b16 %v271
        %v595 = vunpack.c.h.b16 %v271
        %v596 = vunpack.c.l.b16 %v272
        %v597 = vunpack.c.h.b16 %v272
        %v598 = vunpack.c.l.b16 %v273
        %v599 = vunpack.c.h.b16 %v273
        %v600 = vunpack.c.l.b16 %v274
        %v601 = vunpack.c.h.b16 %v274
        %v602 = vunpack.c.l.b16 %v275
        %v603 = vunpack.c.h.b16 %v275
        %v604 = vunpack.c.l.b16 %v276
        %v605 = vunpack.c.h.b16 %v276
        %v606 = vunpack.c.l.b16 %v277
        %v607 = vunpack.c.h.b16 %v277
        %v608 = vunpack.c.l.b16 %v278
        %v609 = vunpack.c.h.b16 %v278
        %v610 = vunpack.c.l.b16 %v279
        %v611 = vunpack.c.h.b16 %v279
        %v612 = vunpack.c.l.b16 %v280
        %v613 = vunpack.c.h.b16 %v280
        %v614 = vunpack.c.l.b16 %v281
        %v615 = vunpack.c.h.b16 %v281
        %v616 = vunpack.c.l.b16 %v282
        %v617 = vunpack.c.h.b16 %v282
        %v618 = vunpack.c.l.b16 %v283
        %v619 = vunpack.c.h.b16 %v283
        %v620 = vunpack.c.l.b16 %v284
        %v621 = vunpack.c.h.b16 %v284
        %v622 = vunpack.c.l.b16 %v285
        %v623 = vunpack.c.h.b16 %v285
        %v624 = vunpack.c.l.b16 %v286
        %v625 = vunpack.c.h.b16 %v286
        %v626 = vunpack.c.l.b16 %v287
        %v627 = vunpack.c.h.b16 %v287
        %v628 = vunpack.c.l.b16 %v288
        %v629 = vunpack.c.h.b16 %v288
        %v630 = vunpack.c.l.b16 %v289
        %v631 = vunpack.c.h.b16 %v289
        %v632 = vunpack.c.l.b16 %v290
        %v633 = vunpack.c.h.b16 %v290
        %v634 = vunpack.c.l.b16 %v291
        %v635 = vunpack.c.h.b16 %v291
        %v636 = vunpack.c.l.b16 %v292
        %v637 = vunpack.c.h.b16 %v292
        %v638 = vunpack.c.l.b16 %v293
        %v639 = vunpack.c.h.b16 %v293
        %v640 = vunpack.c.l.b16 %v294
        %v641 = vunpack.c.h.b16 %v294
        %v642 = vunpack.c.l.b16 %v295
        %v643 = vunpack.c.h.b16 %v295
        %v644 = vunpack.c.l.b16 %v296
        %v645 = vunpack.c.h.b16 %v296
        %v646 = vunpack.c.l.b16 %v297
        %v647 = vunpack.c.h.b16 %v297
        %v648 = vunpack.c.l.b16 %v298
        %v649 = vunpack.c.h.b16 %v298
        %v650 = vunpack.c.l.b16 %v299
        %v651 = vunpack.c.h.b16 %v299
        %v652 = vunpack.c.l.b16 %v300
        %v653 = vunpack.c.h.b16 %v300
        %v654 = vunpack.c.l.b16 %v301
        %v655 = vunpack.c.h.b16 %v301
        %v656 = vunpack.c.l.b16 %v302
        %v657 = vunpack.c.h.b16 %v302
        %v658 = vunpack.c.l.b16 %v303
        %v659 = vunpack.c.h.b16 %v303
        %v660 = vunpack.c.l.b16 %v304
        %v661 = vunpack.c.h.b16 %v304
        %v662 = vunpack.c.l.b16 %v305
        %v663 = vunpack.c.h.b16 %v305
        %v664 = vunpack.c.l.b16 %v306
        %v665 = vunpack.c.h.b16 %v306
        %v666 = vunpack.c.l.b16 %v307
        %v667 = vunpack.c.h.b16 %v307
        %v668 = vunpack.c.l.b16 %v308
        %v669 = vunpack.c.h.b16 %v308
        %v670 = vunpack.c.l.b16 %v309
        %v671 = vunpack.c.h.b16 %v309
        %v672 = vunpack.c.l.b16 %v310
        %v673 = vunpack.c.h.b16 %v310
        %v674 = vunpack.c.l.b16 %v311
        %v675 = vunpack.c.h.b16 %v311
        %v676 = vunpack.c.l.b16 %v312
        %v677 = vunpack.c.h.b16 %v312
        %v678 = vunpack.c.l.b16 %v313
        %v679 = vunpack.c.h.b16 %v313
        %v680 = vunpack.c.l.b16 %v314
        %v681 = vunpack.c.h.b16 %v314
        %v682 = vunpack.c.l.b16 %v315
        %v683 = vunpack.c.h.b16 %v315
        %v684 = vunpack.c.l.b16 %v316
        %v685 = vunpack.c.h.b16 %v316
        %v686 = vunpack.c.l.b16 %v317
        %v687 = vunpack.c.h.b16 %v317
        %v688 = vunpack.c.l.b16 %v318
        %v689 = vunpack.c.h.b16 %v318
        %v690 = vunpack.c.l.b16 %v319
        %v691 = vunpack.c.h.b16 %v319
        %v692 = vunpack.c.l.b16 %v320
        %v693 = vunpack.c.h.b16 %v320
        %v694 = vunpack.c.l.b16 %v321
        %v695 = vunpack.c.h.b16 %v321
        %v696 = vunpack.c.l.b16 %v322
        %v697 = vunpack.c.h.b16 %v322
        %v698 = vunpack.c.l.b16 %v323
        %v699 = vunpack.c.h.b16 %v323
        %v700 = vunpack.c.l.b16 %v324
        %v701 = vunpack.c.h.b16 %v324
        %v702 = vunpack.c.l.b16 %v325
        %v703 = vunpack.c.h.b16 %v325
        %v704 = vunpack.c.l.b16 %v326
        %v705 = vunpack.c.h.b16 %v326
        %v706 = vunpack.c.l.b16 %v327
        %v707 = vunpack.c.h.b16 %v327
        %v708 = vunpack.c.l.b16 %v328
        %v709 = vunpack.c.h.b16 %v328
        %v710 = vunpack.c.l.b16 %v329
        %v711 = vunpack.c.h.b16 %v329
        %v712 = vunpack.c.l.b16 %v330
        %v713 = vunpack.c.h.b16 %v330
        %v714 = vunpack.c.l.b16 %v331
        %v715 = vunpack.c.h.b16 %v331
        %v716 = vunpack.c.l.b16 %v332
        %v717 = vunpack.c.h.b16 %v332
        %v718 = vunpack.c.l.b16 %v333
        %v719 = vunpack.c.h.b16 %v333
        %v720 = vunpack.c.l.b16 %v334
        %v721 = vunpack.c.h.b16 %v334
        %v722 = vunpack.c.l.b16 %v335
        %v723 = vunpack.c.h.b16 %v335
        %v724 = vunpack.c.l.b16 %v336
        %v725 = vunpack.c.h.b16 %v336
        %v726 = vunpack.c.l.b16 %v337
        %v727 = vunpack.c.h.b16 %v337
        %v728 = vunpack.c.l.b16 %v338
        %v729 = vunpack.c.h.b16 %v338
        %v730 = vunpack.c.l.b16 %v339
        %v731 = vunpack.c.h.b16 %v339
        %v732 = vunpack.c.l.b16 %v340
        %v733 = vunpack.c.h.b16 %v340
        %v734 = vunpack.c.l.b16 %v341
        %v735 = vunpack.c.h.b16 %v341
        %v736 = vunpack.c.l.b16 %v342
        %v737 = vunpack.c.h.b16 %v342
        %v738 = vunpack.c.l.b16 %v343
        %v739 = vunpack.c.h.b16 %v343
        %v740 = vunpack.c.l.b16 %v344
        %v741 = vunpack.c.h.b16 %v344
        %v742 = vunpack.c.l.b16 %v345
        %v743 = vunpack.c.h.b16 %v345
        %v744 = vunpack.c.l.b16 %v346
        %v745 = vunpack.c.h.b16 %v346
        %v746 = vunpack.c.l.b16 %v347
        %v747 = vunpack.c.h.b16 %v347
        %v748 = vunpack.c.l.b16 %v348
        %v749 = vunpack.c.h.b16 %v348
        %v750 = vunpack.c.l.b16 %v349
        %v751 = vunpack.c.h.b16 %v349
        %v752 = vunpack.c.l.b16 %v350
        %v753 = vunpack.c.h.b16 %v350
        %v754 = vunpack.c.l.b16 %v351
        %v755 = vunpack.c.h.b16 %v351
        %v756 = vunpack.c.l.b16 %v352
        %v757 = vunpack.c.h.b16 %v352
        %v758 = vunpack.c.l.b16 %v353
        %v759 = vunpack.c.h.b16 %v353
        %v760 = vunpack.c.l.b16 %v354
        %v761 = vunpack.c.h.b16 %v354
        %v762 = vunpack.c.l.b16 %v355
        %v763 = vunpack.c.h.b16 %v355
        %v764 = vunpack.c.l.b16 %v356
        %v765 = vunpack.c.h.b16 %v356
        %v766 = vunpack.c.l.b16 %v357
        %v767 = vunpack.c.h.b16 %v357
        %v768 = vunpack.c.l.b16 %v358
        %v769 = vunpack.c.h.b16 %v358
        %v770 = vunpack.c.l.b16 %v359
        %v771 = vunpack.c.h.b16 %v359
        %v772 = vunpack.c.l.b16 %v360
        %v773 = vunpack.c.h.b16 %v360
        %v774 = vunpack.c.l.b16 %v361
        %v775 = vunpack.c.h.b16 %v361
        %v776 = vunpack.c.l.b16 %v362
        %v777 = vunpack.c.h.b16 %v362
        %v778 = vunpack.c.l.b16 %v363
        %v779 = vunpack.c.h.b16 %v363
        %v780 = vunpack.c.l.b16 %v364
        %v781 = vunpack.c.h.b16 %v364
        %v782 = vunpack.c.l.b16 %v365
        %v783 = vunpack.c.h.b16 %v365
        %v784 = vunpack.c.l.b16 %v366
        %v785 = vunpack.c.h.b16 %v366
        %v786 = vunpack.c.l.b16 %v367
        %v787 = vunpack.c.h.b16 %v367
        %v788 = vunpack.c.l.b16 %v368
        %v789 = vunpack.c.h.b16 %v368
        %v790 = vunpack.c.l.b16 %v369
        %v791 = vunpack.c.h.b16 %v369
        %v792 = vunpack.c.l.b16 %v370
        %v793 = vunpack.c.h.b16 %v370
        %v794 = vpack.c.b16 %v540, %v538
        %v795 = vpack.c.b16 %v541, %v539
        %v796 = vpack.c.b16 %v544, %v542
        %v797 = vpack.c.b16 %v545, %v543
        %v798 = vpack.c.b16 %v548, %v546
        %v799 = vpack.c.b16 %v549, %v547
        %v800 = vpack.c.b16 %v552, %v550
        %v801 = vpack.c.b16 %v553, %v551
        %v802 = vpack.c.b16 %v556, %v554
        %v803 = vpack.c.b16 %v557, %v555
        %v804 = vpack.c.b16 %v560, %v558
        %v805 = vpack.c.b16 %v561, %v559
        %v806 = vpack.c.b16 %v564, %v562
        %v807 = vpack.c.b16 %v565, %v563
        %v808 = vpack.c.b16 %v568, %v566
        %v809 = vpack.c.b16 %v569, %v567
        %v810 = vpack.c.b16 %v572, %v570
        %v811 = vpack.c.b16 %v573, %v571
        %v812 = vpack.c.b16 %v576, %v574
        %v813 = vpack.c.b16 %v577, %v575
        %v814 = vpack.c.b16 %v580, %v578
        %v815 = vpack.c.b16 %v581, %v579
        %v816 = vpack.c.b16 %v584, %v582
        %v817 = vpack.c.b16 %v585, %v583
        %v818 = vpack.c.b16 %v588, %v586
        %v819 = vpack.c.b16 %v589, %v587
        %v820 = vpack.c.b16 %v592, %v590
        %v821 = vpack.c.b16 %v593, %v591
        %v822 = vpack.c.b16 %v596, %v594
        %v823 = vpack.c.b16 %v597, %v595
        %v824 = vpack.c.b16 %v600, %v598
        %v825 = vpack.c.b16 %v601, %v599
        %v826 = vpack.c.b16 %v604, %v602
        %v827 = vpack.c.b16 %v605, %v603
        %v828 = vpack.c.b16 %v608, %v606
        %v829 = vpack.c.b16 %v609, %v607
        %v830 = vpack.c.b16 %v612, %v610
        %v831 = vpack.c.b16 %v613, %v611
        %v832 = vpack.c.b16 %v616, %v614
        %v833 = vpack.c.b16 %v617, %v615
        %v834 = vpack.c.b16 %v620, %v618
        %v835 = vpack.c.b16 %v621, %v619
        %v836 = vpack.c.b16 %v624, %v622
        %v837 = vpack.c.b16 %v625, %v623
        %v838 = vpack.c.b16 %v628, %v626
        %v839 = vpack.c.b16 %v629, %v627
        %v840 = vpack.c.b16 %v632, %v630
        %v841 = vpack.c.b16 %v633, %v631
        %v842 = vpack.c.b16 %v636, %v634
        %v843 = vpack.c.b16 %v637, %v635
        %v844 = vpack.c.b16 %v640, %v638
        %v845 = vpack.c.b16 %v641, %v639
        %v846 = vpack.c.b16 %v644, %v642
        %v847 = vpack.c.b16 %v645, %v643
        %v848 = vpack.c.b16 %v648, %v646
        %v849 = vpack.c.b16 %v649, %v647
        %v850 = vpack.c.b16 %v652, %v650
        %v851 = vpack.c.b16 %v653, %v651
        %v852 = vpack.c.b16 %v656, %v654
        %v853 = vpack.c.b16 %v657, %v655
        %v854 = vpack.c.b16 %v660, %v658
        %v855 = vpack.c.b16 %v661, %v659
        %v856 = vpack.c.b16 %v664, %v662
        %v857 = vpack.c.b16 %v665, %v663
        %v858 = vpack.c.b16 %v668, %v666
        %v859 = vpack.c.b16 %v669, %v667
        %v860 = vpack.c.b16 %v672, %v670
        %v861 = vpack.c.b16 %v673, %v671
        %v862 = vpack.c.b16 %v676, %v674
        %v863 = vpack.c.b16 %v677, %v675
        %v864 = vpack.c.b16 %v680, %v678
        %v865 = vpack.c.b16 %v681, %v679
        %v866 = vpack.c.b16 %v684, %v682
        %v867 = vpack.c.b16 %v685, %v683
        %v868 = vpack.c.b16 %v688, %v686
        %v869 = vpack.c.b16 %v689, %v687
        %v870 = vpack.c.b16 %v692, %v690
        %v871 = vpack.c.b16 %v693, %v691
        %v872 = vpack.c.b16 %v696, %v694
        %v873 = vpack.c.b16 %v697, %v695
        %v874 = vpack.c.b16 %v700, %v698
        %v875 = vpack.c.b16 %v701, %v699
        %v876 = vpack.c.b16 %v704, %v702
        %v877 = vpack.c.b16 %v705, %v703
        %v878 = vpack.c.b16 %v708, %v706
        %v879 = vpack.c.b16 %v709, %v707
        %v880 = vpack.c.b16 %v712, %v710
        %v881 = vpack.c.b16 %v713, %v711
        %v882 = vpack.c.b16 %v716, %v714
        %v883 = vpack.c.b16 %v717, %v715
        %v884 = vpack.c.b16 %v720, %v718
        %v885 = vpack.c.b16 %v721, %v719
        %v886 = vpack.c.b16 %v724, %v722
        %v887 = vpack.c.b16 %v725, %v723
        %v888 = vpack.c.b16 %v728, %v726
        %v889 = vpack.c.b16 %v729, %v727
        %v890 = vpack.c.b16 %v732, %v730
        %v891 = vpack.c.b16 %v733, %v731
        %v892 = vpack.c.b16 %v736, %v734
        %v893 = vpack.c.b16 %v737, %v735
        %v894 = vpack.c.b16 %v740, %v738
        %v895 = vpack.c.b16 %v741, %v739
        %v896 = vpack.c.b16 %v744, %v742
        %v897 = vpack.c.b16 %v745, %v743
        %v898 = vpack.c.b16 %v748, %v746
        %v899 = vpack.c.b16 %v749, %v747
        %v900 = vpack.c.b16 %v752, %v750
        %v901 = vpack.c.b16 %v753, %v751
        %v902 = vpack.c.b16 %v756, %v754
        %v903 = vpack.c.b16 %v757, %v755
        %v904 = vpack.c.b16 %v760, %v758
        %v905 = vpack.c.b16 %v761, %v759
        %v906 = vpack.c.b16 %v764, %v762
        %v907 = vpack.c.b16 %v765, %v763
        %v908 = vpack.c.b16 %v768, %v766
        %v909 = vpack.c.b16 %v769, %v767
        %v910 = vpack.c.b16 %v772, %v770
        %v911 = vpack.c.b16 %v773, %v771
        %v912 = vpack.c.b16 %v776, %v774
        %v913 = vpack.c.b16 %v777, %v775
        %v914 = vpack.c.b16 %v780, %v778
        %v915 = vpack.c.b16 %v781, %v779
        %v916 = vpack.c.b16 %v784, %v782
        %v917 = vpack.c.b16 %v785, %v783
        %v918 = vpack.c.b16 %v788, %v786
        %v919 = vpack.c.b16 %v789, %v787
        %v920 = vpack.c.b16 %v792, %v790
        %v921 = vpack.c.b16 %v793, %v791
        %v1082 = vunpack.c.l.b16 %v371
        %v1083 = vunpack.c.l.b16 %v372
        %v1084 = vunpack.c.l.b16 %v373
        %v1085 = vunpack.c.l.b16 %v374
        %v1086 = vunpack.c.l.b16 %v375
        %v1087 = vunpack.c.l.b16 %v376
        %v1088 = vunpack.c.l.b16 %v377
        %v1089 = vunpack.c.l.b16 %v378
        %v1090 = vunpack.c.l.b16 %v379
        %v1091 = vunpack.c.l.b16 %v380
        %v1092 = vunpack.c.l.b16 %v381
        %v1093 = vunpack.c.l.b16 %v382
        %v1094 = vunpack.c.l.b16 %v383
        %v1095 = vunpack.c.l.b16 %v384
        %v1096 = vunpack.c.l.b16 %v385
        %v1097 = vunpack.c.l.b16 %v386
        %v1098 = vunpack.c.l.b16 %v387
        %v1099 = vunpack.c.l.b16 %v388
        %v1100 = vunpack.c.l.b16 %v389
        %v1101 = vunpack.c.l.b16 %v390
        %v1102 = vunpack.c.l.b16 %v391
        %v1103 = vunpack.c.l.b16 %v392
        %v1104 = vunpack.c.l.b16 %v393
        %v1105 = vunpack.c.l.b16 %v394
        %v1106 = vunpack.c.l.b16 %v395
        %v1107 = vunpack.c.l.b16 %v396
        %v1108 = vunpack.c.l.b16 %v397
        %v1109 = vunpack.c.l.b16 %v398
        %v1110 = vunpack.c.l.b16 %v399
        %v1111 = vunpack.c.l.b16 %v400
        %v1112 = vunpack.c.l.b16 %v401
        %v1113 = vunpack.c.l.b16 %v402
        %v1114 = vpack.c.b16 %v1083, %v1082
        %v1115 = vpack.c.b16 %v1085, %v1084
        %v1116 = vpack.c.b16 %v1087, %v1086
        %v1117 = vpack.c.b16 %v1089, %v1088
        %v1118 = vpack.c.b16 %v1091, %v1090
        %v1119 = vpack.c.b16 %v1093, %v1092
        %v1120 = vpack.c.b16 %v1095, %v1094
        %v1121 = vpack.c.b16 %v1097, %v1096
        %v1122 = vpack.c.b16 %v1099, %v1098
        %v1123 = vpack.c.b16 %v1101, %v1100
        %v1124 = vpack.c.b16 %v1103, %v1102
        %v1125 = vpack.c.b16 %v1105, %v1104
        %v1126 = vpack.c.b16 %v1107, %v1106
        %v1127 = vpack.c.b16 %v1109, %v1108
        %v1128 = vpack.c.b16 %v1111, %v1110
        %v1129 = vpack.c.b16 %v1113, %v1112
        %1146 = vmatprep.subr.bf16.mxu0 0
        %1147 = vmatpush1.bf16.msra.mxu0 %v1114
        %1148 = vmatprep.subr.bf16.mxu0 0
        %1149 = vmatpush1.bf16.msra.mxu0 %v1115
        %1150 = vmatprep.subr.bf16.mxu0 0
        %1151 = vmatpush1.bf16.msra.mxu0 %v1116
        %1152 = vmatprep.subr.bf16.mxu0 0
        %1153 = vmatpush1.bf16.msra.mxu0 %v1117
        %1154 = vmatprep.subr.bf16.mxu0 0
        %1155 = vmatpush1.bf16.msra.mxu0 %v1118
        %1156 = vmatprep.subr.bf16.mxu0 0
        %1157 = vmatpush1.bf16.msra.mxu0 %v1119
        %1158 = vmatprep.subr.bf16.mxu0 0
        %1159 = vmatpush1.bf16.msra.mxu0 %v1120
        %1160 = vmatprep.subr.bf16.mxu0 0
        %1161 = vmatpush1.bf16.msra.mxu0 %v1121
        %1162 = vmatprep.subr.bf16.mxu0 0
        %1163 = vmatpush1.bf16.msra.mxu0 %v1122
        %1164 = vmatprep.subr.bf16.mxu0 0
        %1165 = vmatpush1.bf16.msra.mxu0 %v1123
        %1166 = vmatprep.subr.bf16.mxu0 0
        %1167 = vmatpush1.bf16.msra.mxu0 %v1124
        %1168 = vmatprep.subr.bf16.mxu0 0
        %1169 = vmatpush1.bf16.msra.mxu0 %v1125
        %1170 = vmatprep.subr.bf16.mxu0 0
        %1171 = vmatpush1.bf16.msra.mxu0 %v1126
        %1172 = vmatprep.subr.bf16.mxu0 0
        %1173 = vmatpush1.bf16.msra.mxu0 %v1127
        %1174 = vmatprep.subr.bf16.mxu0 0
        %1175 = vmatpush1.bf16.msra.mxu0 %v1128
        %1176 = vmatprep.subr.bf16.mxu0 0
        %1177 = vmatpush1.bf16.msra.mxu0 %v1129
        %1178 = vmatprep.mubr.bf16.mxu0 %v795
        %1179 = vmatmul.mubr.bf16.gmra.mrb[0].mxu0 %v794
        %v1180 = vpop.f32.mrb[0].mxu0
        %v1181 = vadd.f32 %v408, %v1180
        %v1182 = vpop.f32.mrb[0].mxu0
        %v1183 = vpop.f32.mrb[0].mxu0
        %v1184 = vadd.f32 %v408, %v1183
        %v1185 = vpop.f32.mrb[0].mxu0
        %1186 = vmatprep.mubr.bf16.mxu0 %v797
        %1187 = vmatmul.mubr.bf16.gmra.mrb[0].mxu0 %v796
        %v1188 = vpop.f32.mrb[0].mxu0
        %v1189 = vadd.f32 %v408, %v1188
        %v1190 = vpop.f32.mrb[0].mxu0
        %v1191 = vpop.f32.mrb[0].mxu0
        %v1192 = vadd.f32 %v408, %v1191
        %v1193 = vpop.f32.mrb[0].mxu0
        %1194 = vmatprep.mubr.bf16.mxu0 %v799
        %1195 = vmatmul.mubr.bf16.gmra.mrb[0].mxu0 %v798
        %v1196 = vpop.f32.mrb[0].mxu0
        %v1197 = vadd.f32 %v408, %v1196
        %v1198 = vpop.f32.mrb[0].mxu0
        %v1199 = vpop.f32.mrb[0].mxu0
        %v1200 = vadd.f32 %v408, %v1199
        %v1201 = vpop.f32.mrb[0].mxu0
        %1202 = vmatprep.mubr.bf16.mxu0 %v801
        %1203 = vmatmul.mubr.bf16.gmra.mrb[0].mxu0 %v800
        %v1204 = vpop.f32.mrb[0].mxu0
        %v1205 = vadd.f32 %v408, %v1204
        %v1206 = vpop.f32.mrb[0].mxu0
        %v1207 = vpop.f32.mrb[0].mxu0
        %v1208 = vadd.f32 %v408, %v1207
        %v1209 = vpop.f32.mrb[0].mxu0
        %1210 = vmatprep.mubr.bf16.mxu0 %v803
        %1211 = vmatmul.mubr.bf16.gmra.mrb[0].mxu0 %v802
        %v1212 = vpop.f32.mrb[0].mxu0
        %v1213 = vadd.f32 %v408, %v1212
        %v1214 = vpop.f32.mrb[0].mxu0
        %v1215 = vpop.f32.mrb[0].mxu0
        %v1216 = vadd.f32 %v408, %v1215
        %v1217 = vpop.f32.mrb[0].mxu0
        %1218 = vmatprep.mubr.bf16.mxu0 %v805
        %1219 = vmatmul.mubr.bf16.gmra.mrb[0].mxu0 %v804
        %v1220 = vpop.f32.mrb[0].mxu0
        %v1221 = vadd.f32 %v408, %v1220
        %v1222 = vpop.f32.mrb[0].mxu0
        %v1223 = vpop.f32.mrb[0].mxu0
        %v1224 = vadd.f32 %v408, %v1223
        %v1225 = vpop.f32.mrb[0].mxu0
        %1226 = vmatprep.mubr.bf16.mxu0 %v807
        %1227 = vmatmul.mubr.bf16.gmra.mrb[0].mxu0 %v806
        %v1228 = vpop.f32.mrb[0].mxu0
        %v1229 = vadd.f32 %v408, %v1228
        %v1230 = vpop.f32.mrb[0].mxu0
        %v1231 = vpop.f32.mrb[0].mxu0
        %v1232 = vadd.f32 %v408, %v1231
        %v1233 = vpop.f32.mrb[0].mxu0
        %1234 = vmatprep.mubr.bf16.mxu0 %v809
        %1235 = vmatmul.mubr.bf16.gmra.mrb[0].mxu0 %v808
        %v1236 = vpop.f32.mrb[0].mxu0
        %v1237 = vadd.f32 %v408, %v1236
        %v1238 = vpop.f32.mrb[0].mxu0
        %v1239 = vpop.f32.mrb[0].mxu0
        %v1240 = vadd.f32 %v408, %v1239
        %v1241 = vpop.f32.mrb[0].mxu0
        %1242 = vmatprep.mubr.bf16.mxu0 %v811
        %1243 = vmatmul.mubr.bf16.gmra.mrb[0].mxu0 %v810
        %v1244 = vpop.f32.mrb[0].mxu0
        %v1245 = vadd.f32 %v408, %v1244
        %v1246 = vpop.f32.mrb[0].mxu0
        %v1247 = vpop.f32.mrb[0].mxu0
        %v1248 = vadd.f32 %v408, %v1247
        %v1249 = vpop.f32.mrb[0].mxu0
        %1250 = vmatprep.mubr.bf16.mxu0 %v813
        %1251 = vmatmul.mubr.bf16.gmra.mrb[0].mxu0 %v812
        %v1252 = vpop.f32.mrb[0].mxu0
        %v1253 = vadd.f32 %v408, %v1252
        %v1254 = vpop.f32.mrb[0].mxu0
        %v1255 = vpop.f32.mrb[0].mxu0
        %v1256 = vadd.f32 %v408, %v1255
        %v1257 = vpop.f32.mrb[0].mxu0
        %1258 = vmatprep.mubr.bf16.mxu0 %v815
        %1259 = vmatmul.mubr.bf16.gmra.mrb[0].mxu0 %v814
        %v1260 = vpop.f32.mrb[0].mxu0
        %v1261 = vadd.f32 %v408, %v1260
        %v1262 = vpop.f32.mrb[0].mxu0
        %v1263 = vpop.f32.mrb[0].mxu0
        %v1264 = vadd.f32 %v408, %v1263
        %v1265 = vpop.f32.mrb[0].mxu0
        %1266 = vmatprep.mubr.bf16.mxu0 %v817
        %1267 = vmatmul.mubr.bf16.gmra.mrb[0].mxu0 %v816
        %v1268 = vpop.f32.mrb[0].mxu0
        %v1269 = vadd.f32 %v408, %v1268
        %v1270 = vpop.f32.mrb[0].mxu0
        %v1271 = vpop.f32.mrb[0].mxu0
        %v1272 = vadd.f32 %v408, %v1271
        %v1273 = vpop.f32.mrb[0].mxu0
        %1274 = vmatprep.mubr.bf16.mxu0 %v819
        %1275 = vmatmul.mubr.bf16.gmra.mrb[0].mxu0 %v818
        %v1276 = vpop.f32.mrb[0].mxu0
        %v1277 = vadd.f32 %v408, %v1276
        %v1278 = vpop.f32.mrb[0].mxu0
        %v1279 = vpop.f32.mrb[0].mxu0
        %v1280 = vadd.f32 %v408, %v1279
        %v1281 = vpop.f32.mrb[0].mxu0
        %1282 = vmatprep.mubr.bf16.mxu0 %v821
        %1283 = vmatmul.mubr.bf16.gmra.mrb[0].mxu0 %v820
        %v1284 = vpop.f32.mrb[0].mxu0
        %v1285 = vadd.f32 %v408, %v1284
        %v1286 = vpop.f32.mrb[0].mxu0
        %v1287 = vpop.f32.mrb[0].mxu0
        %v1288 = vadd.f32 %v408, %v1287
        %v1289 = vpop.f32.mrb[0].mxu0
        %1290 = vmatprep.mubr.bf16.mxu0 %v823
        %1291 = vmatmul.mubr.bf16.gmra.mrb[0].mxu0 %v822
        %v1292 = vpop.f32.mrb[0].mxu0
        %v1293 = vadd.f32 %v408, %v1292
        %v1294 = vpop.f32.mrb[0].mxu0
        %v1295 = vpop.f32.mrb[0].mxu0
        %v1296 = vadd.f32 %v408, %v1295
        %v1297 = vpop.f32.mrb[0].mxu0
        %1298 = vmatprep.mubr.bf16.mxu0 %v825
        %1299 = vmatmul.mubr.bf16.gmra.mrb[0].mxu0 %v824
        %v1300 = vpop.f32.mrb[0].mxu0
        %v1301 = vadd.f32 %v408, %v1300
        %v1302 = vpop.f32.mrb[0].mxu0
        %v1303 = vpop.f32.mrb[0].mxu0
        %v1304 = vadd.f32 %v408, %v1303
        %v1305 = vpop.f32.mrb[0].mxu0
        %1306 = vmatprep.mubr.bf16.mxu0 %v827
        %1307 = vmatmul.mubr.bf16.gmra.mrb[0].mxu0 %v826
        %v1308 = vpop.f32.mrb[0].mxu0
        %v1309 = vadd.f32 %v408, %v1308
        %v1310 = vpop.f32.mrb[0].mxu0
        %v1311 = vpop.f32.mrb[0].mxu0
        %v1312 = vadd.f32 %v408, %v1311
        %v1313 = vpop.f32.mrb[0].mxu0
        %1314 = vmatprep.mubr.bf16.mxu0 %v829
        %1315 = vmatmul.mubr.bf16.gmra.mrb[0].mxu0 %v828
        %v1316 = vpop.f32.mrb[0].mxu0
        %v1317 = vadd.f32 %v408, %v1316
        %v1318 = vpop.f32.mrb[0].mxu0
        %v1319 = vpop.f32.mrb[0].mxu0
        %v1320 = vadd.f32 %v408, %v1319
        %v1321 = vpop.f32.mrb[0].mxu0
        %1322 = vmatprep.mubr.bf16.mxu0 %v831
        %1323 = vmatmul.mubr.bf16.gmra.mrb[0].mxu0 %v830
        %v1324 = vpop.f32.mrb[0].mxu0
        %v1325 = vadd.f32 %v408, %v1324
        %v1326 = vpop.f32.mrb[0].mxu0
        %v1327 = vpop.f32.mrb[0].mxu0
        %v1328 = vadd.f32 %v408, %v1327
        %v1329 = vpop.f32.mrb[0].mxu0
        %1330 = vmatprep.mubr.bf16.mxu0 %v833
        %1331 = vmatmul.mubr.bf16.gmra.mrb[0].mxu0 %v832
        %v1332 = vpop.f32.mrb[0].mxu0
        %v1333 = vadd.f32 %v408, %v1332
        %v1334 = vpop.f32.mrb[0].mxu0
        %v1335 = vpop.f32.mrb[0].mxu0
        %v1336 = vadd.f32 %v408, %v1335
        %v1337 = vpop.f32.mrb[0].mxu0
        %1338 = vmatprep.mubr.bf16.mxu0 %v835
        %1339 = vmatmul.mubr.bf16.gmra.mrb[0].mxu0 %v834
        %v1340 = vpop.f32.mrb[0].mxu0
        %v1341 = vadd.f32 %v408, %v1340
        %v1342 = vpop.f32.mrb[0].mxu0
        %v1343 = vpop.f32.mrb[0].mxu0
        %v1344 = vadd.f32 %v408, %v1343
        %v1345 = vpop.f32.mrb[0].mxu0
        %1346 = vmatprep.mubr.bf16.mxu0 %v837
        %1347 = vmatmul.mubr.bf16.gmra.mrb[0].mxu0 %v836
        %v1348 = vpop.f32.mrb[0].mxu0
        %v1349 = vadd.f32 %v408, %v1348
        %v1350 = vpop.f32.mrb[0].mxu0
        %v1351 = vpop.f32.mrb[0].mxu0
        %v1352 = vadd.f32 %v408, %v1351
        %v1353 = vpop.f32.mrb[0].mxu0
        %1354 = vmatprep.mubr.bf16.mxu0 %v839
        %1355 = vmatmul.mubr.bf16.gmra.mrb[0].mxu0 %v838
        %v1356 = vpop.f32.mrb[0].mxu0
        %v1357 = vadd.f32 %v408, %v1356
        %v1358 = vpop.f32.mrb[0].mxu0
        %v1359 = vpop.f32.mrb[0].mxu0
        %v1360 = vadd.f32 %v408, %v1359
        %v1361 = vpop.f32.mrb[0].mxu0
        %1362 = vmatprep.mubr.bf16.mxu0 %v841
        %1363 = vmatmul.mubr.bf16.gmra.mrb[0].mxu0 %v840
        %v1364 = vpop.f32.mrb[0].mxu0
        %v1365 = vadd.f32 %v408, %v1364
        %v1366 = vpop.f32.mrb[0].mxu0
        %v1367 = vpop.f32.mrb[0].mxu0
        %v1368 = vadd.f32 %v408, %v1367
        %v1369 = vpop.f32.mrb[0].mxu0
        %1370 = vmatprep.mubr.bf16.mxu0 %v843
        %1371 = vmatmul.mubr.bf16.gmra.mrb[0].mxu0 %v842
        %v1372 = vpop.f32.mrb[0].mxu0
        %v1373 = vadd.f32 %v408, %v1372
        %v1374 = vpop.f32.mrb[0].mxu0
        %v1375 = vpop.f32.mrb[0].mxu0
        %v1376 = vadd.f32 %v408, %v1375
        %v1377 = vpop.f32.mrb[0].mxu0
        %1378 = vmatprep.mubr.bf16.mxu0 %v845
        %1379 = vmatmul.mubr.bf16.gmra.mrb[0].mxu0 %v844
        %v1380 = vpop.f32.mrb[0].mxu0
        %v1381 = vadd.f32 %v408, %v1380
        %v1382 = vpop.f32.mrb[0].mxu0
        %v1383 = vpop.f32.mrb[0].mxu0
        %v1384 = vadd.f32 %v408, %v1383
        %v1385 = vpop.f32.mrb[0].mxu0
        %1386 = vmatprep.mubr.bf16.mxu0 %v847
        %1387 = vmatmul.mubr.bf16.gmra.mrb[0].mxu0 %v846
        %v1388 = vpop.f32.mrb[0].mxu0
        %v1389 = vadd.f32 %v408, %v1388
        %v1390 = vpop.f32.mrb[0].mxu0
        %v1391 = vpop.f32.mrb[0].mxu0
        %v1392 = vadd.f32 %v408, %v1391
        %v1393 = vpop.f32.mrb[0].mxu0
        %1394 = vmatprep.mubr.bf16.mxu0 %v849
        %1395 = vmatmul.mubr.bf16.gmra.mrb[0].mxu0 %v848
        %v1396 = vpop.f32.mrb[0].mxu0
        %v1397 = vadd.f32 %v408, %v1396
        %v1398 = vpop.f32.mrb[0].mxu0
        %v1399 = vpop.f32.mrb[0].mxu0
        %v1400 = vadd.f32 %v408, %v1399
        %v1401 = vpop.f32.mrb[0].mxu0
        %1402 = vmatprep.mubr.bf16.mxu0 %v851
        %1403 = vmatmul.mubr.bf16.gmra.mrb[0].mxu0 %v850
        %v1404 = vpop.f32.mrb[0].mxu0
        %v1405 = vadd.f32 %v408, %v1404
        %v1406 = vpop.f32.mrb[0].mxu0
        %v1407 = vpop.f32.mrb[0].mxu0
        %v1408 = vadd.f32 %v408, %v1407
        %v1409 = vpop.f32.mrb[0].mxu0
        %1410 = vmatprep.mubr.bf16.mxu0 %v853
        %1411 = vmatmul.mubr.bf16.gmra.mrb[0].mxu0 %v852
        %v1412 = vpop.f32.mrb[0].mxu0
        %v1413 = vadd.f32 %v408, %v1412
        %v1414 = vpop.f32.mrb[0].mxu0
        %v1415 = vpop.f32.mrb[0].mxu0
        %v1416 = vadd.f32 %v408, %v1415
        %v1417 = vpop.f32.mrb[0].mxu0
        %1418 = vmatprep.mubr.bf16.mxu0 %v855
        %1419 = vmatmul.mubr.bf16.gmra.mrb[0].mxu0 %v854
        %v1420 = vpop.f32.mrb[0].mxu0
        %v1421 = vadd.f32 %v408, %v1420
        %v1422 = vpop.f32.mrb[0].mxu0
        %v1423 = vpop.f32.mrb[0].mxu0
        %v1424 = vadd.f32 %v408, %v1423
        %v1425 = vpop.f32.mrb[0].mxu0
        %1426 = vmatprep.mubr.bf16.mxu0 %v857
        %1427 = vmatmul.mubr.bf16.gmra.mrb[0].mxu0 %v856
        %v1428 = vpop.f32.mrb[0].mxu0
        %v1429 = vadd.f32 %v408, %v1428
        %v1430 = vpop.f32.mrb[0].mxu0
        %v1431 = vpop.f32.mrb[0].mxu0
        %v1432 = vadd.f32 %v408, %v1431
        %v1433 = vpop.f32.mrb[0].mxu0
        %1434 = vmatprep.mubr.bf16.mxu0 %v859
        %1435 = vmatmul.mubr.bf16.gmra.mrb[0].mxu0 %v858
        %v1436 = vpop.f32.mrb[0].mxu0
        %v1437 = vadd.f32 %v408, %v1436
        %v1438 = vpop.f32.mrb[0].mxu0
        %v1439 = vpop.f32.mrb[0].mxu0
        %v1440 = vadd.f32 %v408, %v1439
        %v1441 = vpop.f32.mrb[0].mxu0
        %1442 = vmatprep.mubr.bf16.mxu0 %v861
        %1443 = vmatmul.mubr.bf16.gmra.mrb[0].mxu0 %v860
        %v1444 = vpop.f32.mrb[0].mxu0
        %v1445 = vadd.f32 %v408, %v1444
        %v1446 = vpop.f32.mrb[0].mxu0
        %v1447 = vpop.f32.mrb[0].mxu0
        %v1448 = vadd.f32 %v408, %v1447
        %v1449 = vpop.f32.mrb[0].mxu0
        %1450 = vmatprep.mubr.bf16.mxu0 %v863
        %1451 = vmatmul.mubr.bf16.gmra.mrb[0].mxu0 %v862
        %v1452 = vpop.f32.mrb[0].mxu0
        %v1453 = vadd.f32 %v408, %v1452
        %v1454 = vpop.f32.mrb[0].mxu0
        %v1455 = vpop.f32.mrb[0].mxu0
        %v1456 = vadd.f32 %v408, %v1455
        %v1457 = vpop.f32.mrb[0].mxu0
        %1458 = vmatprep.mubr.bf16.mxu0 %v865
        %1459 = vmatmul.mubr.bf16.gmra.mrb[0].mxu0 %v864
        %v1460 = vpop.f32.mrb[0].mxu0
        %v1461 = vadd.f32 %v408, %v1460
        %v1462 = vpop.f32.mrb[0].mxu0
        %v1463 = vpop.f32.mrb[0].mxu0
        %v1464 = vadd.f32 %v408, %v1463
        %v1465 = vpop.f32.mrb[0].mxu0
        %1466 = vmatprep.mubr.bf16.mxu0 %v867
        %1467 = vmatmul.mubr.bf16.gmra.mrb[0].mxu0 %v866
        %v1468 = vpop.f32.mrb[0].mxu0
        %v1469 = vadd.f32 %v408, %v1468
        %v1470 = vpop.f32.mrb[0].mxu0
        %v1471 = vpop.f32.mrb[0].mxu0
        %v1472 = vadd.f32 %v408, %v1471
        %v1473 = vpop.f32.mrb[0].mxu0
        %1474 = vmatprep.mubr.bf16.mxu0 %v869
        %1475 = vmatmul.mubr.bf16.gmra.mrb[0].mxu0 %v868
        %v1476 = vpop.f32.mrb[0].mxu0
        %v1477 = vadd.f32 %v408, %v1476
        %v1478 = vpop.f32.mrb[0].mxu0
        %v1479 = vpop.f32.mrb[0].mxu0
        %v1480 = vadd.f32 %v408, %v1479
        %v1481 = vpop.f32.mrb[0].mxu0
        %1482 = vmatprep.mubr.bf16.mxu0 %v871
        %1483 = vmatmul.mubr.bf16.gmra.mrb[0].mxu0 %v870
        %v1484 = vpop.f32.mrb[0].mxu0
        %v1485 = vadd.f32 %v408, %v1484
        %v1486 = vpop.f32.mrb[0].mxu0
        %v1487 = vpop.f32.mrb[0].mxu0
        %v1488 = vadd.f32 %v408, %v1487
        %v1489 = vpop.f32.mrb[0].mxu0
        %1490 = vmatprep.mubr.bf16.mxu0 %v873
        %1491 = vmatmul.mubr.bf16.gmra.mrb[0].mxu0 %v872
        %v1492 = vpop.f32.mrb[0].mxu0
        %v1493 = vadd.f32 %v408, %v1492
        %v1494 = vpop.f32.mrb[0].mxu0
        %v1495 = vpop.f32.mrb[0].mxu0
        %v1496 = vadd.f32 %v408, %v1495
        %v1497 = vpop.f32.mrb[0].mxu0
        %1498 = vmatprep.mubr.bf16.mxu0 %v875
        %1499 = vmatmul.mubr.bf16.gmra.mrb[0].mxu0 %v874
        %v1500 = vpop.f32.mrb[0].mxu0
        %v1501 = vadd.f32 %v408, %v1500
        %v1502 = vpop.f32.mrb[0].mxu0
        %v1503 = vpop.f32.mrb[0].mxu0
        %v1504 = vadd.f32 %v408, %v1503
        %v1505 = vpop.f32.mrb[0].mxu0
        %1506 = vmatprep.mubr.bf16.mxu0 %v877
        %1507 = vmatmul.mubr.bf16.gmra.mrb[0].mxu0 %v876
        %v1508 = vpop.f32.mrb[0].mxu0
        %v1509 = vadd.f32 %v408, %v1508
        %v1510 = vpop.f32.mrb[0].mxu0
        %v1511 = vpop.f32.mrb[0].mxu0
        %v1512 = vadd.f32 %v408, %v1511
        %v1513 = vpop.f32.mrb[0].mxu0
        %1514 = vmatprep.mubr.bf16.mxu0 %v879
        %1515 = vmatmul.mubr.bf16.gmra.mrb[0].mxu0 %v878
        %v1516 = vpop.f32.mrb[0].mxu0
        %v1517 = vadd.f32 %v408, %v1516
        %v1518 = vpop.f32.mrb[0].mxu0
        %v1519 = vpop.f32.mrb[0].mxu0
        %v1520 = vadd.f32 %v408, %v1519
        %v1521 = vpop.f32.mrb[0].mxu0
        %1522 = vmatprep.mubr.bf16.mxu0 %v881
        %1523 = vmatmul.mubr.bf16.gmra.mrb[0].mxu0 %v880
        %v1524 = vpop.f32.mrb[0].mxu0
        %v1525 = vadd.f32 %v408, %v1524
        %v1526 = vpop.f32.mrb[0].mxu0
        %v1527 = vpop.f32.mrb[0].mxu0
        %v1528 = vadd.f32 %v408, %v1527
        %v1529 = vpop.f32.mrb[0].mxu0
        %1530 = vmatprep.mubr.bf16.mxu0 %v883
        %1531 = vmatmul.mubr.bf16.gmra.mrb[0].mxu0 %v882
        %v1532 = vpop.f32.mrb[0].mxu0
        %v1533 = vadd.f32 %v408, %v1532
        %v1534 = vpop.f32.mrb[0].mxu0
        %v1535 = vpop.f32.mrb[0].mxu0
        %v1536 = vadd.f32 %v408, %v1535
        %v1537 = vpop.f32.mrb[0].mxu0
        %1538 = vmatprep.mubr.bf16.mxu0 %v885
        %1539 = vmatmul.mubr.bf16.gmra.mrb[0].mxu0 %v884
        %v1540 = vpop.f32.mrb[0].mxu0
        %v1541 = vadd.f32 %v408, %v1540
        %v1542 = vpop.f32.mrb[0].mxu0
        %v1543 = vpop.f32.mrb[0].mxu0
        %v1544 = vadd.f32 %v408, %v1543
        %v1545 = vpop.f32.mrb[0].mxu0
        %1546 = vmatprep.mubr.bf16.mxu0 %v887
        %1547 = vmatmul.mubr.bf16.gmra.mrb[0].mxu0 %v886
        %v1548 = vpop.f32.mrb[0].mxu0
        %v1549 = vadd.f32 %v408, %v1548
        %v1550 = vpop.f32.mrb[0].mxu0
        %v1551 = vpop.f32.mrb[0].mxu0
        %v1552 = vadd.f32 %v408, %v1551
        %v1553 = vpop.f32.mrb[0].mxu0
        %1554 = vmatprep.mubr.bf16.mxu0 %v889
        %1555 = vmatmul.mubr.bf16.gmra.mrb[0].mxu0 %v888
        %v1556 = vpop.f32.mrb[0].mxu0
        %v1557 = vadd.f32 %v408, %v1556
        %v1558 = vpop.f32.mrb[0].mxu0
        %v1559 = vpop.f32.mrb[0].mxu0
        %v1560 = vadd.f32 %v408, %v1559
        %v1561 = vpop.f32.mrb[0].mxu0
        %1562 = vmatprep.mubr.bf16.mxu0 %v891
        %1563 = vmatmul.mubr.bf16.gmra.mrb[0].mxu0 %v890
        %v1564 = vpop.f32.mrb[0].mxu0
        %v1565 = vadd.f32 %v408, %v1564
        %v1566 = vpop.f32.mrb[0].mxu0
        %v1567 = vpop.f32.mrb[0].mxu0
        %v1568 = vadd.f32 %v408, %v1567
        %v1569 = vpop.f32.mrb[0].mxu0
        %1570 = vmatprep.mubr.bf16.mxu0 %v893
        %1571 = vmatmul.mubr.bf16.gmra.mrb[0].mxu0 %v892
        %v1572 = vpop.f32.mrb[0].mxu0
        %v1573 = vadd.f32 %v408, %v1572
        %v1574 = vpop.f32.mrb[0].mxu0
        %v1575 = vpop.f32.mrb[0].mxu0
        %v1576 = vadd.f32 %v408, %v1575
        %v1577 = vpop.f32.mrb[0].mxu0
        %1578 = vmatprep.mubr.bf16.mxu0 %v895
        %1579 = vmatmul.mubr.bf16.gmra.mrb[0].mxu0 %v894
        %v1580 = vpop.f32.mrb[0].mxu0
        %v1581 = vadd.f32 %v408, %v1580
        %v1582 = vpop.f32.mrb[0].mxu0
        %v1583 = vpop.f32.mrb[0].mxu0
        %v1584 = vadd.f32 %v408, %v1583
        %v1585 = vpop.f32.mrb[0].mxu0
        %1586 = vmatprep.mubr.bf16.mxu0 %v897
        %1587 = vmatmul.mubr.bf16.gmra.mrb[0].mxu0 %v896
        %v1588 = vpop.f32.mrb[0].mxu0
        %v1589 = vadd.f32 %v408, %v1588
        %v1590 = vpop.f32.mrb[0].mxu0
        %v1591 = vpop.f32.mrb[0].mxu0
        %v1592 = vadd.f32 %v408, %v1591
        %v1593 = vpop.f32.mrb[0].mxu0
        %1594 = vmatprep.mubr.bf16.mxu0 %v899
        %1595 = vmatmul.mubr.bf16.gmra.mrb[0].mxu0 %v898
        %v1596 = vpop.f32.mrb[0].mxu0
        %v1597 = vadd.f32 %v408, %v1596
        %v1598 = vpop.f32.mrb[0].mxu0
        %v1599 = vpop.f32.mrb[0].mxu0
        %v1600 = vadd.f32 %v408, %v1599
        %v1601 = vpop.f32.mrb[0].mxu0
        %1602 = vmatprep.mubr.bf16.mxu0 %v901
        %1603 = vmatmul.mubr.bf16.gmra.mrb[0].mxu0 %v900
        %v1604 = vpop.f32.mrb[0].mxu0
        %v1605 = vadd.f32 %v408, %v1604
        %v1606 = vpop.f32.mrb[0].mxu0
        %v1607 = vpop.f32.mrb[0].mxu0
        %v1608 = vadd.f32 %v408, %v1607
        %v1609 = vpop.f32.mrb[0].mxu0
        %1610 = vmatprep.mubr.bf16.mxu0 %v903
        %1611 = vmatmul.mubr.bf16.gmra.mrb[0].mxu0 %v902
        %v1612 = vpop.f32.mrb[0].mxu0
        %v1613 = vadd.f32 %v408, %v1612
        %v1614 = vpop.f32.mrb[0].mxu0
        %v1615 = vpop.f32.mrb[0].mxu0
        %v1616 = vadd.f32 %v408, %v1615
        %v1617 = vpop.f32.mrb[0].mxu0
        %1618 = vmatprep.mubr.bf16.mxu0 %v905
        %1619 = vmatmul.mubr.bf16.gmra.mrb[0].mxu0 %v904
        %v1620 = vpop.f32.mrb[0].mxu0
        %v1621 = vadd.f32 %v408, %v1620
        %v1622 = vpop.f32.mrb[0].mxu0
        %v1623 = vpop.f32.mrb[0].mxu0
        %v1624 = vadd.f32 %v408, %v1623
        %v1625 = vpop.f32.mrb[0].mxu0
        %1626 = vmatprep.mubr.bf16.mxu0 %v907
        %1627 = vmatmul.mubr.bf16.gmra.mrb[0].mxu0 %v906
        %v1628 = vpop.f32.mrb[0].mxu0
        %v1629 = vadd.f32 %v408, %v1628
        %v1630 = vpop.f32.mrb[0].mxu0
        %v1631 = vpop.f32.mrb[0].mxu0
        %v1632 = vadd.f32 %v408, %v1631
        %v1633 = vpop.f32.mrb[0].mxu0
        %1634 = vmatprep.mubr.bf16.mxu0 %v909
        %1635 = vmatmul.mubr.bf16.gmra.mrb[0].mxu0 %v908
        %v1636 = vpop.f32.mrb[0].mxu0
        %v1637 = vadd.f32 %v408, %v1636
        %v1638 = vpop.f32.mrb[0].mxu0
        %v1639 = vpop.f32.mrb[0].mxu0
        %v1640 = vadd.f32 %v408, %v1639
        %v1641 = vpop.f32.mrb[0].mxu0
        %1642 = vmatprep.mubr.bf16.mxu0 %v911
        %1643 = vmatmul.mubr.bf16.gmra.mrb[0].mxu0 %v910
        %v1644 = vpop.f32.mrb[0].mxu0
        %v1645 = vadd.f32 %v408, %v1644
        %v1646 = vpop.f32.mrb[0].mxu0
        %v1647 = vpop.f32.mrb[0].mxu0
        %v1648 = vadd.f32 %v408, %v1647
        %v1649 = vpop.f32.mrb[0].mxu0
        %1650 = vmatprep.mubr.bf16.mxu0 %v913
        %1651 = vmatmul.mubr.bf16.gmra.mrb[0].mxu0 %v912
        %v1652 = vpop.f32.mrb[0].mxu0
        %v1653 = vadd.f32 %v408, %v1652
        %v1654 = vpop.f32.mrb[0].mxu0
        %v1655 = vpop.f32.mrb[0].mxu0
        %v1656 = vadd.f32 %v408, %v1655
        %v1657 = vpop.f32.mrb[0].mxu0
        %1658 = vmatprep.mubr.bf16.mxu0 %v915
        %1659 = vmatmul.mubr.bf16.gmra.mrb[0].mxu0 %v914
        %v1660 = vpop.f32.mrb[0].mxu0
        %v1661 = vadd.f32 %v408, %v1660
        %v1662 = vpop.f32.mrb[0].mxu0
        %v1663 = vpop.f32.mrb[0].mxu0
        %v1664 = vadd.f32 %v408, %v1663
        %v1665 = vpop.f32.mrb[0].mxu0
        %1666 = vmatprep.mubr.bf16.mxu0 %v917
        %1667 = vmatmul.mubr.bf16.gmra.mrb[0].mxu0 %v916
        %v1668 = vpop.f32.mrb[0].mxu0
        %v1669 = vadd.f32 %v408, %v1668
        %v1670 = vpop.f32.mrb[0].mxu0
        %v1671 = vpop.f32.mrb[0].mxu0
        %v1672 = vadd.f32 %v408, %v1671
        %v1673 = vpop.f32.mrb[0].mxu0
        %1674 = vmatprep.mubr.bf16.mxu0 %v919
        %1675 = vmatmul.mubr.bf16.gmra.mrb[0].mxu0 %v918
        %v1676 = vpop.f32.mrb[0].mxu0
        %v1677 = vadd.f32 %v408, %v1676
        %v1678 = vpop.f32.mrb[0].mxu0
        %v1679 = vpop.f32.mrb[0].mxu0
        %v1680 = vadd.f32 %v408, %v1679
        %v1681 = vpop.f32.mrb[0].mxu0
        %1682 = vmatprep.mubr.bf16.mxu0 %v921
        %1683 = vmatmul.mubr.bf16.gmra.mrb[0].mxu0 %v920
        %v1684 = vpop.f32.mrb[0].mxu0
        %v1685 = vadd.f32 %v408, %v1684
        %v1686 = vpop.f32.mrb[0].mxu0
        %v1687 = vpop.f32.mrb[0].mxu0
        %v1688 = vadd.f32 %v408, %v1687
        %v1689 = vpop.f32.mrb[0].mxu0
        %1690 = vdwg.mxu0
        %v1691 = vmax.f32 %v1181, 0.0
        %v1692 = vmax.f32 %v1184, 0.0
        %v1693 = vmax.f32 %v1189, 0.0
        %v1694 = vmax.f32 %v1192, 0.0
        %v1695 = vmax.f32 %v1197, 0.0
        %v1696 = vmax.f32 %v1200, 0.0
        %v1697 = vmax.f32 %v1205, 0.0
        %v1698 = vmax.f32 %v1208, 0.0
        %v1699 = vmax.f32 %v1213, 0.0
        %v1700 = vmax.f32 %v1216, 0.0
        %v1701 = vmax.f32 %v1221, 0.0
        %v1702 = vmax.f32 %v1224, 0.0
        %v1703 = vmax.f32 %v1229, 0.0
        %v1704 = vmax.f32 %v1232, 0.0
        %v1705 = vmax.f32 %v1237, 0.0
        %v1706 = vmax.f32 %v1240, 0.0
        %v1707 = vmax.f32 %v1245, 0.0
        %v1708 = vmax.f32 %v1248, 0.0
        %v1709 = vmax.f32 %v1253, 0.0
        %v1710 = vmax.f32 %v1256, 0.0
        %v1711 = vmax.f32 %v1261, 0.0
        %v1712 = vmax.f32 %v1264, 0.0
        %v1713 = vmax.f32 %v1269, 0.0
        %v1714 = vmax.f32 %v1272, 0.0
        %v1715 = vmax.f32 %v1277, 0.0
        %v1716 = vmax.f32 %v1280, 0.0
        %v1717 = vmax.f32 %v1285, 0.0
        %v1718 = vmax.f32 %v1288, 0.0
        %v1719 = vmax.f32 %v1293, 0.0
        %v1720 = vmax.f32 %v1296, 0.0
        %v1721 = vmax.f32 %v1301, 0.0
        %v1722 = vmax.f32 %v1304, 0.0
        %v1723 = vmax.f32 %v1309, 0.0
        %v1724 = vmax.f32 %v1312, 0.0
        %v1725 = vmax.f32 %v1317, 0.0
        %v1726 = vmax.f32 %v1320, 0.0
        %v1727 = vmax.f32 %v1325, 0.0
        %v1728 = vmax.f32 %v1328, 0.0
        %v1729 = vmax.f32 %v1333, 0.0
        %v1730 = vmax.f32 %v1336, 0.0
        %v1731 = vmax.f32 %v1341, 0.0
        %v1732 = vmax.f32 %v1344, 0.0
        %v1733 = vmax.f32 %v1349, 0.0
        %v1734 = vmax.f32 %v1352, 0.0
        %v1735 = vmax.f32 %v1357, 0.0
        %v1736 = vmax.f32 %v1360, 0.0
        %v1737 = vmax.f32 %v1365, 0.0
        %v1738 = vmax.f32 %v1368, 0.0
        %v1739 = vmax.f32 %v1373, 0.0
        %v1740 = vmax.f32 %v1376, 0.0
        %v1741 = vmax.f32 %v1381, 0.0
        %v1742 = vmax.f32 %v1384, 0.0
        %v1743 = vmax.f32 %v1389, 0.0
        %v1744 = vmax.f32 %v1392, 0.0
        %v1745 = vmax.f32 %v1397, 0.0
        %v1746 = vmax.f32 %v1400, 0.0
        %v1747 = vmax.f32 %v1405, 0.0
        %v1748 = vmax.f32 %v1408, 0.0
        %v1749 = vmax.f32 %v1413, 0.0
        %v1750 = vmax.f32 %v1416, 0.0
        %v1751 = vmax.f32 %v1421, 0.0
        %v1752 = vmax.f32 %v1424, 0.0
        %v1753 = vmax.f32 %v1429, 0.0
        %v1754 = vmax.f32 %v1432, 0.0
        %v1755 = vmax.f32 %v1437, 0.0
        %v1756 = vmax.f32 %v1440, 0.0
        %v1757 = vmax.f32 %v1445, 0.0
        %v1758 = vmax.f32 %v1448, 0.0
        %v1759 = vmax.f32 %v1453, 0.0
        %v1760 = vmax.f32 %v1456, 0.0
        %v1761 = vmax.f32 %v1461, 0.0
        %v1762 = vmax.f32 %v1464, 0.0
        %v1763 = vmax.f32 %v1469, 0.0
        %v1764 = vmax.f32 %v1472, 0.0
        %v1765 = vmax.f32 %v1477, 0.0
        %v1766 = vmax.f32 %v1480, 0.0
        %v1767 = vmax.f32 %v1485, 0.0
        %v1768 = vmax.f32 %v1488, 0.0
        %v1769 = vmax.f32 %v1493, 0.0
        %v1770 = vmax.f32 %v1496, 0.0
        %v1771 = vmax.f32 %v1501, 0.0
        %v1772 = vmax.f32 %v1504, 0.0
        %v1773 = vmax.f32 %v1509, 0.0
        %v1774 = vmax.f32 %v1512, 0.0
        %v1775 = vmax.f32 %v1517, 0.0
        %v1776 = vmax.f32 %v1520, 0.0
        %v1777 = vmax.f32 %v1525, 0.0
        %v1778 = vmax.f32 %v1528, 0.0
        %v1779 = vmax.f32 %v1533, 0.0
        %v1780 = vmax.f32 %v1536, 0.0
        %v1781 = vmax.f32 %v1541, 0.0
        %v1782 = vmax.f32 %v1544, 0.0
        %v1783 = vmax.f32 %v1549, 0.0
        %v1784 = vmax.f32 %v1552, 0.0
        %v1785 = vmax.f32 %v1557, 0.0
        %v1786 = vmax.f32 %v1560, 0.0
        %v1787 = vmax.f32 %v1565, 0.0
        %v1788 = vmax.f32 %v1568, 0.0
        %v1789 = vmax.f32 %v1573, 0.0
        %v1790 = vmax.f32 %v1576, 0.0
        %v1791 = vmax.f32 %v1581, 0.0
        %v1792 = vmax.f32 %v1584, 0.0
        %v1793 = vmax.f32 %v1589, 0.0
        %v1794 = vmax.f32 %v1592, 0.0
        %v1795 = vmax.f32 %v1597, 0.0
        %v1796 = vmax.f32 %v1600, 0.0
        %v1797 = vmax.f32 %v1605, 0.0
        %v1798 = vmax.f32 %v1608, 0.0
        %v1799 = vmax.f32 %v1613, 0.0
        %v1800 = vmax.f32 %v1616, 0.0
        %v1801 = vmax.f32 %v1621, 0.0
        %v1802 = vmax.f32 %v1624, 0.0
        %v1803 = vmax.f32 %v1629, 0.0
        %v1804 = vmax.f32 %v1632, 0.0
        %v1805 = vmax.f32 %v1637, 0.0
        %v1806 = vmax.f32 %v1640, 0.0
        %v1807 = vmax.f32 %v1645, 0.0
        %v1808 = vmax.f32 %v1648, 0.0
        %v1809 = vmax.f32 %v1653, 0.0
        %v1810 = vmax.f32 %v1656, 0.0
        %v1811 = vmax.f32 %v1661, 0.0
        %v1812 = vmax.f32 %v1664, 0.0
        %v1813 = vmax.f32 %v1669, 0.0
        %v1814 = vmax.f32 %v1672, 0.0
        %v1815 = vmax.f32 %v1677, 0.0
        %v1816 = vmax.f32 %v1680, 0.0
        %v1817 = vmax.f32 %v1685, 0.0
        %v1818 = vmax.f32 %v1688, 0.0
        %v1819 = vpack.c.bf16 %v1692, %v1691
        %v1820 = vpack.c.bf16 %v1694, %v1693
        %v1821 = vpack.c.bf16 %v1696, %v1695
        %v1822 = vpack.c.bf16 %v1698, %v1697
        %v1823 = vpack.c.bf16 %v1700, %v1699
        %v1824 = vpack.c.bf16 %v1702, %v1701
        %v1825 = vpack.c.bf16 %v1704, %v1703
        %v1826 = vpack.c.bf16 %v1706, %v1705
        %v1827 = vpack.c.bf16 %v1708, %v1707
        %v1828 = vpack.c.bf16 %v1710, %v1709
        %v1829 = vpack.c.bf16 %v1712, %v1711
        %v1830 = vpack.c.bf16 %v1714, %v1713
        %v1831 = vpack.c.bf16 %v1716, %v1715
        %v1832 = vpack.c.bf16 %v1718, %v1717
        %v1833 = vpack.c.bf16 %v1720, %v1719
        %v1834 = vpack.c.bf16 %v1722, %v1721
        %v1835 = vpack.c.bf16 %v1724, %v1723
        %v1836 = vpack.c.bf16 %v1726, %v1725
        %v1837 = vpack.c.bf16 %v1728, %v1727
        %v1838 = vpack.c.bf16 %v1730, %v1729
        %v1839 = vpack.c.bf16 %v1732, %v1731
        %v1840 = vpack.c.bf16 %v1734, %v1733
        %v1841 = vpack.c.bf16 %v1736, %v1735
        %v1842 = vpack.c.bf16 %v1738, %v1737
        %v1843 = vpack.c.bf16 %v1740, %v1739
        %v1844 = vpack.c.bf16 %v1742, %v1741
        %v1845 = vpack.c.bf16 %v1744, %v1743
        %v1846 = vpack.c.bf16 %v1746, %v1745
        %v1847 = vpack.c.bf16 %v1748, %v1747
        %v1848 = vpack.c.bf16 %v1750, %v1749
        %v1849 = vpack.c.bf16 %v1752, %v1751
        %v1850 = vpack.c.bf16 %v1754, %v1753
        %v1851 = vpack.c.bf16 %v1756, %v1755
        %v1852 = vpack.c.bf16 %v1758, %v1757
        %v1853 = vpack.c.bf16 %v1760, %v1759
        %v1854 = vpack.c.bf16 %v1762, %v1761
        %v1855 = vpack.c.bf16 %v1764, %v1763
        %v1856 = vpack.c.bf16 %v1766, %v1765
        %v1857 = vpack.c.bf16 %v1768, %v1767
        %v1858 = vpack.c.bf16 %v1770, %v1769
        %v1859 = vpack.c.bf16 %v1772, %v1771
        %v1860 = vpack.c.bf16 %v1774, %v1773
        %v1861 = vpack.c.bf16 %v1776, %v1775
        %v1862 = vpack.c.bf16 %v1778, %v1777
        %v1863 = vpack.c.bf16 %v1780, %v1779
        %v1864 = vpack.c.bf16 %v1782, %v1781
        %v1865 = vpack.c.bf16 %v1784, %v1783
        %v1866 = vpack.c.bf16 %v1786, %v1785
        %v1867 = vpack.c.bf16 %v1788, %v1787
        %v1868 = vpack.c.bf16 %v1790, %v1789
        %v1869 = vpack.c.bf16 %v1792, %v1791
        %v1870 = vpack.c.bf16 %v1794, %v1793
        %v1871 = vpack.c.bf16 %v1796, %v1795
        %v1872 = vpack.c.bf16 %v1798, %v1797
        %v1873 = vpack.c.bf16 %v1800, %v1799
        %v1874 = vpack.c.bf16 %v1802, %v1801
        %v1875 = vpack.c.bf16 %v1804, %v1803
        %v1876 = vpack.c.bf16 %v1806, %v1805
        %v1877 = vpack.c.bf16 %v1808, %v1807
        %v1878 = vpack.c.bf16 %v1810, %v1809
        %v1879 = vpack.c.bf16 %v1812, %v1811
        %v1880 = vpack.c.bf16 %v1814, %v1813
        %v1881 = vpack.c.bf16 %v1816, %v1815
        %v1882 = vpack.c.bf16 %v1818, %v1817
        %v1947 = vunpack.c.l.b16 %v1819
        %v1948 = vunpack.c.h.b16 %v1819
        %v1949 = vunpack.c.l.b16 %v1820
        %v1950 = vunpack.c.h.b16 %v1820
        %v1951 = vunpack.c.l.b16 %v1821
        %v1952 = vunpack.c.h.b16 %v1821
        %v1953 = vunpack.c.l.b16 %v1822
        %v1954 = vunpack.c.h.b16 %v1822
        %v1955 = vunpack.c.l.b16 %v1823
        %v1956 = vunpack.c.h.b16 %v1823
        %v1957 = vunpack.c.l.b16 %v1824
        %v1958 = vunpack.c.h.b16 %v1824
        %v1959 = vunpack.c.l.b16 %v1825
        %v1960 = vunpack.c.h.b16 %v1825
        %v1961 = vunpack.c.l.b16 %v1826
        %v1962 = vunpack.c.h.b16 %v1826
        %v1963 = vunpack.c.l.b16 %v1827
        %v1964 = vunpack.c.h.b16 %v1827
        %v1965 = vunpack.c.l.b16 %v1828
        %v1966 = vunpack.c.h.b16 %v1828
        %v1967 = vunpack.c.l.b16 %v1829
        %v1968 = vunpack.c.h.b16 %v1829
        %v1969 = vunpack.c.l.b16 %v1830
        %v1970 = vunpack.c.h.b16 %v1830
        %v1971 = vunpack.c.l.b16 %v1831
        %v1972 = vunpack.c.h.b16 %v1831
        %v1973 = vunpack.c.l.b16 %v1832
        %v1974 = vunpack.c.h.b16 %v1832
        %v1975 = vunpack.c.l.b16 %v1833
        %v1976 = vunpack.c.h.b16 %v1833
        %v1977 = vunpack.c.l.b16 %v1834
        %v1978 = vunpack.c.h.b16 %v1834
        %v1979 = vunpack.c.l.b16 %v1835
        %v1980 = vunpack.c.h.b16 %v1835
        %v1981 = vunpack.c.l.b16 %v1836
        %v1982 = vunpack.c.h.b16 %v1836
        %v1983 = vunpack.c.l.b16 %v1837
        %v1984 = vunpack.c.h.b16 %v1837
        %v1985 = vunpack.c.l.b16 %v1838
        %v1986 = vunpack.c.h.b16 %v1838
        %v1987 = vunpack.c.l.b16 %v1839
        %v1988 = vunpack.c.h.b16 %v1839
        %v1989 = vunpack.c.l.b16 %v1840
        %v1990 = vunpack.c.h.b16 %v1840
        %v1991 = vunpack.c.l.b16 %v1841
        %v1992 = vunpack.c.h.b16 %v1841
        %v1993 = vunpack.c.l.b16 %v1842
        %v1994 = vunpack.c.h.b16 %v1842
        %v1995 = vunpack.c.l.b16 %v1843
        %v1996 = vunpack.c.h.b16 %v1843
        %v1997 = vunpack.c.l.b16 %v1844
        %v1998 = vunpack.c.h.b16 %v1844
        %v1999 = vunpack.c.l.b16 %v1845
        %v2000 = vunpack.c.h.b16 %v1845
        %v2001 = vunpack.c.l.b16 %v1846
        %v2002 = vunpack.c.h.b16 %v1846
        %v2003 = vunpack.c.l.b16 %v1847
        %v2004 = vunpack.c.h.b16 %v1847
        %v2005 = vunpack.c.l.b16 %v1848
        %v2006 = vunpack.c.h.b16 %v1848
        %v2007 = vunpack.c.l.b16 %v1849
        %v2008 = vunpack.c.h.b16 %v1849
        %v2009 = vunpack.c.l.b16 %v1850
        %v2010 = vunpack.c.h.b16 %v1850
        %v2011 = vunpack.c.l.b16 %v1851
        %v2012 = vunpack.c.h.b16 %v1851
        %v2013 = vunpack.c.l.b16 %v1852
        %v2014 = vunpack.c.h.b16 %v1852
        %v2015 = vunpack.c.l.b16 %v1853
        %v2016 = vunpack.c.h.b16 %v1853
        %v2017 = vunpack.c.l.b16 %v1854
        %v2018 = vunpack.c.h.b16 %v1854
        %v2019 = vunpack.c.l.b16 %v1855
        %v2020 = vunpack.c.h.b16 %v1855
        %v2021 = vunpack.c.l.b16 %v1856
        %v2022 = vunpack.c.h.b16 %v1856
        %v2023 = vunpack.c.l.b16 %v1857
        %v2024 = vunpack.c.h.b16 %v1857
        %v2025 = vunpack.c.l.b16 %v1858
        %v2026 = vunpack.c.h.b16 %v1858
        %v2027 = vunpack.c.l.b16 %v1859
        %v2028 = vunpack.c.h.b16 %v1859
        %v2029 = vunpack.c.l.b16 %v1860
        %v2030 = vunpack.c.h.b16 %v1860
        %v2031 = vunpack.c.l.b16 %v1861
        %v2032 = vunpack.c.h.b16 %v1861
        %v2033 = vunpack.c.l.b16 %v1862
        %v2034 = vunpack.c.h.b16 %v1862
        %v2035 = vunpack.c.l.b16 %v1863
        %v2036 = vunpack.c.h.b16 %v1863
        %v2037 = vunpack.c.l.b16 %v1864
        %v2038 = vunpack.c.h.b16 %v1864
        %v2039 = vunpack.c.l.b16 %v1865
        %v2040 = vunpack.c.h.b16 %v1865
        %v2041 = vunpack.c.l.b16 %v1866
        %v2042 = vunpack.c.h.b16 %v1866
        %v2043 = vunpack.c.l.b16 %v1867
        %v2044 = vunpack.c.h.b16 %v1867
        %v2045 = vunpack.c.l.b16 %v1868
        %v2046 = vunpack.c.h.b16 %v1868
        %v2047 = vunpack.c.l.b16 %v1869
        %v2048 = vunpack.c.h.b16 %v1869
        %v2049 = vunpack.c.l.b16 %v1870
        %v2050 = vunpack.c.h.b16 %v1870
        %v2051 = vunpack.c.l.b16 %v1871
        %v2052 = vunpack.c.h.b16 %v1871
        %v2053 = vunpack.c.l.b16 %v1872
        %v2054 = vunpack.c.h.b16 %v1872
        %v2055 = vunpack.c.l.b16 %v1873
        %v2056 = vunpack.c.h.b16 %v1873
        %v2057 = vunpack.c.l.b16 %v1874
        %v2058 = vunpack.c.h.b16 %v1874
        %v2059 = vunpack.c.l.b16 %v1875
        %v2060 = vunpack.c.h.b16 %v1875
        %v2061 = vunpack.c.l.b16 %v1876
        %v2062 = vunpack.c.h.b16 %v1876
        %v2063 = vunpack.c.l.b16 %v1877
        %v2064 = vunpack.c.h.b16 %v1877
        %v2065 = vunpack.c.l.b16 %v1878
        %v2066 = vunpack.c.h.b16 %v1878
        %v2067 = vunpack.c.l.b16 %v1879
        %v2068 = vunpack.c.h.b16 %v1879
        %v2069 = vunpack.c.l.b16 %v1880
        %v2070 = vunpack.c.h.b16 %v1880
        %v2071 = vunpack.c.l.b16 %v1881
        %v2072 = vunpack.c.h.b16 %v1881
        %v2073 = vunpack.c.l.b16 %v1882
        %v2074 = vunpack.c.h.b16 %v1882
        %v2075 = vpack.c.b16 %v1947, %v1947
        %v2076 = vpack.c.b16 %v1948, %v1948
        %v2077 = vpack.c.b16 %v1949, %v1949
        %v2078 = vpack.c.b16 %v1950, %v1950
        %v2079 = vpack.c.b16 %v1951, %v1951
        %v2080 = vpack.c.b16 %v1952, %v1952
        %v2081 = vpack.c.b16 %v1953, %v1953
        %v2082 = vpack.c.b16 %v1954, %v1954
        %v2083 = vpack.c.b16 %v1955, %v1955
        %v2084 = vpack.c.b16 %v1956, %v1956
        %v2085 = vpack.c.b16 %v1957, %v1957
        %v2086 = vpack.c.b16 %v1958, %v1958
        %v2087 = vpack.c.b16 %v1959, %v1959
        %v2088 = vpack.c.b16 %v1960, %v1960
        %v2089 = vpack.c.b16 %v1961, %v1961
        %v2090 = vpack.c.b16 %v1962, %v1962
        %v2091 = vpack.c.b16 %v1963, %v1963
        %v2092 = vpack.c.b16 %v1964, %v1964
        %v2093 = vpack.c.b16 %v1965, %v1965
        %v2094 = vpack.c.b16 %v1966, %v1966
        %v2095 = vpack.c.b16 %v1967, %v1967
        %v2096 = vpack.c.b16 %v1968, %v1968
        %v2097 = vpack.c.b16 %v1969, %v1969
        %v2098 = vpack.c.b16 %v1970, %v1970
        %v2099 = vpack.c.b16 %v1971, %v1971
        %v2100 = vpack.c.b16 %v1972, %v1972
        %v2101 = vpack.c.b16 %v1973, %v1973
        %v2102 = vpack.c.b16 %v1974, %v1974
        %v2103 = vpack.c.b16 %v1975, %v1975
        %v2104 = vpack.c.b16 %v1976, %v1976
        %v2105 = vpack.c.b16 %v1977, %v1977
        %v2106 = vpack.c.b16 %v1978, %v1978
        %v2107 = vpack.c.b16 %v1979, %v1979
        %v2108 = vpack.c.b16 %v1980, %v1980
        %v2109 = vpack.c.b16 %v1981, %v1981
        %v2110 = vpack.c.b16 %v1982, %v1982
        %v2111 = vpack.c.b16 %v1983, %v1983
        %v2112 = vpack.c.b16 %v1984, %v1984
        %v2113 = vpack.c.b16 %v1985, %v1985
        %v2114 = vpack.c.b16 %v1986, %v1986
        %v2115 = vpack.c.b16 %v1987, %v1987
        %v2116 = vpack.c.b16 %v1988, %v1988
        %v2117 = vpack.c.b16 %v1989, %v1989
        %v2118 = vpack.c.b16 %v1990, %v1990
        %v2119 = vpack.c.b16 %v1991, %v1991
        %v2120 = vpack.c.b16 %v1992, %v1992
        %v2121 = vpack.c.b16 %v1993, %v1993
        %v2122 = vpack.c.b16 %v1994, %v1994
        %v2123 = vpack.c.b16 %v1995, %v1995
        %v2124 = vpack.c.b16 %v1996, %v1996
        %v2125 = vpack.c.b16 %v1997, %v1997
        %v2126 = vpack.c.b16 %v1998, %v1998
        %v2127 = vpack.c.b16 %v1999, %v1999
        %v2128 = vpack.c.b16 %v2000, %v2000
        %v2129 = vpack.c.b16 %v2001, %v2001
        %v2130 = vpack.c.b16 %v2002, %v2002
        %v2131 = vpack.c.b16 %v2003, %v2003
        %v2132 = vpack.c.b16 %v2004, %v2004
        %v2133 = vpack.c.b16 %v2005, %v2005
        %v2134 = vpack.c.b16 %v2006, %v2006
        %v2135 = vpack.c.b16 %v2007, %v2007
        %v2136 = vpack.c.b16 %v2008, %v2008
        %v2137 = vpack.c.b16 %v2009, %v2009
        %v2138 = vpack.c.b16 %v2010, %v2010
        %v2139 = vpack.c.b16 %v2011, %v2011
        %v2140 = vpack.c.b16 %v2012, %v2012
        %v2141 = vpack.c.b16 %v2013, %v2013
        %v2142 = vpack.c.b16 %v2014, %v2014
        %v2143 = vpack.c.b16 %v2015, %v2015
        %v2144 = vpack.c.b16 %v2016, %v2016
        %v2145 = vpack.c.b16 %v2017, %v2017
        %v2146 = vpack.c.b16 %v2018, %v2018
        %v2147 = vpack.c.b16 %v2019, %v2019
        %v2148 = vpack.c.b16 %v2020, %v2020
        %v2149 = vpack.c.b16 %v2021, %v2021
        %v2150 = vpack.c.b16 %v2022, %v2022
        %v2151 = vpack.c.b16 %v2023, %v2023
        %v2152 = vpack.c.b16 %v2024, %v2024
        %v2153 = vpack.c.b16 %v2025, %v2025
        %v2154 = vpack.c.b16 %v2026, %v2026
        %v2155 = vpack.c.b16 %v2027, %v2027
        %v2156 = vpack.c.b16 %v2028, %v2028
        %v2157 = vpack.c.b16 %v2029, %v2029
        %v2158 = vpack.c.b16 %v2030, %v2030
        %v2159 = vpack.c.b16 %v2031, %v2031
        %v2160 = vpack.c.b16 %v2032, %v2032
        %v2161 = vpack.c.b16 %v2033, %v2033
        %v2162 = vpack.c.b16 %v2034, %v2034
        %v2163 = vpack.c.b16 %v2035, %v2035
        %v2164 = vpack.c.b16 %v2036, %v2036
        %v2165 = vpack.c.b16 %v2037, %v2037
        %v2166 = vpack.c.b16 %v2038, %v2038
        %v2167 = vpack.c.b16 %v2039, %v2039
        %v2168 = vpack.c.b16 %v2040, %v2040
        %v2169 = vpack.c.b16 %v2041, %v2041
        %v2170 = vpack.c.b16 %v2042, %v2042
        %v2171 = vpack.c.b16 %v2043, %v2043
        %v2172 = vpack.c.b16 %v2044, %v2044
        %v2173 = vpack.c.b16 %v2045, %v2045
        %v2174 = vpack.c.b16 %v2046, %v2046
        %v2175 = vpack.c.b16 %v2047, %v2047
        %v2176 = vpack.c.b16 %v2048, %v2048
        %v2177 = vpack.c.b16 %v2049, %v2049
        %v2178 = vpack.c.b16 %v2050, %v2050
        %v2179 = vpack.c.b16 %v2051, %v2051
        %v2180 = vpack.c.b16 %v2052, %v2052
        %v2181 = vpack.c.b16 %v2053, %v2053
        %v2182 = vpack.c.b16 %v2054, %v2054
        %v2183 = vpack.c.b16 %v2055, %v2055
        %v2184 = vpack.c.b16 %v2056, %v2056
        %v2185 = vpack.c.b16 %v2057, %v2057
        %v2186 = vpack.c.b16 %v2058, %v2058
        %v2187 = vpack.c.b16 %v2059, %v2059
        %v2188 = vpack.c.b16 %v2060, %v2060
        %v2189 = vpack.c.b16 %v2061, %v2061
        %v2190 = vpack.c.b16 %v2062, %v2062
        %v2191 = vpack.c.b16 %v2063, %v2063
        %v2192 = vpack.c.b16 %v2064, %v2064
        %v2193 = vpack.c.b16 %v2065, %v2065
        %v2194 = vpack.c.b16 %v2066, %v2066
        %v2195 = vpack.c.b16 %v2067, %v2067
        %v2196 = vpack.c.b16 %v2068, %v2068
        %v2197 = vpack.c.b16 %v2069, %v2069
        %v2198 = vpack.c.b16 %v2070, %v2070
        %v2199 = vpack.c.b16 %v2071, %v2071
        %v2200 = vpack.c.b16 %v2072, %v2072
        %v2201 = vpack.c.b16 %v2073, %v2073
        %v2202 = vpack.c.b16 %v2074, %v2074
        %2331 = vst [vmem:[%s236] sm:$0xf] %v2075
        %2332 = vst [vmem:[%s236 + $0x4] sm:$0xf] %v2076
        %2333 = vst [vmem:[%s236 + $0x8] sm:$0xf] %v2077
        %2334 = vst [vmem:[%s236 + $0xc] sm:$0xf] %v2078
        %2335 = vst [vmem:[%s236 + $0x10] sm:$0xf] %v2079
        %2336 = vst [vmem:[%s236 + $0x14] sm:$0xf] %v2080
        %2337 = vst [vmem:[%s236 + $0x18] sm:$0xf] %v2081
        %2338 = vst [vmem:[%s236 + $0x1c] sm:$0xf] %v2082
        %2339 = vst [vmem:[%s236 + $0x20] sm:$0xf] %v2083
        %2340 = vst [vmem:[%s236 + $0x24] sm:$0xf] %v2084
        %2341 = vst [vmem:[%s236 + $0x28] sm:$0xf] %v2085
        %2342 = vst [vmem:[%s236 + $0x2c] sm:$0xf] %v2086
        %2343 = vst [vmem:[%s236 + $0x30] sm:$0xf] %v2087
        %2344 = vst [vmem:[%s236 + $0x34] sm:$0xf] %v2088
        %2345 = vst [vmem:[%s236 + $0x38] sm:$0xf] %v2089
        %2346 = vst [vmem:[%s236 + $0x3c] sm:$0xf] %v2090
        %2347 = vst [vmem:[%s236 + $0x40] sm:$0xf] %v2091
        %2348 = vst [vmem:[%s236 + $0x44] sm:$0xf] %v2092
        %2349 = vst [vmem:[%s236 + $0x48] sm:$0xf] %v2093
        %2350 = vst [vmem:[%s236 + $0x4c] sm:$0xf] %v2094
        %2351 = vst [vmem:[%s236 + $0x50] sm:$0xf] %v2095
        %2352 = vst [vmem:[%s236 + $0x54] sm:$0xf] %v2096
        %2353 = vst [vmem:[%s236 + $0x58] sm:$0xf] %v2097
        %2354 = vst [vmem:[%s236 + $0x5c] sm:$0xf] %v2098
        %2355 = vst [vmem:[%s236 + $0x60] sm:$0xf] %v2099
        %2356 = vst [vmem:[%s236 + $0x64] sm:$0xf] %v2100
        %2357 = vst [vmem:[%s236 + $0x68] sm:$0xf] %v2101
        %2358 = vst [vmem:[%s236 + $0x6c] sm:$0xf] %v2102
        %2359 = vst [vmem:[%s236 + $0x70] sm:$0xf] %v2103
        %2360 = vst [vmem:[%s236 + $0x74] sm:$0xf] %v2104
        %2361 = vst [vmem:[%s236 + $0x78] sm:$0xf] %v2105
        %2362 = vst [vmem:[%s236 + $0x7c] sm:$0xf] %v2106
        %2363 = vst [vmem:[%s236 + $0x80] sm:$0xf] %v2107
        %2364 = vst [vmem:[%s236 + $0x84] sm:$0xf] %v2108
        %2365 = vst [vmem:[%s236 + $0x88] sm:$0xf] %v2109
        %2366 = vst [vmem:[%s236 + $0x8c] sm:$0xf] %v2110
        %2367 = vst [vmem:[%s236 + $0x90] sm:$0xf] %v2111
        %2368 = vst [vmem:[%s236 + $0x94] sm:$0xf] %v2112
        %2369 = vst [vmem:[%s236 + $0x98] sm:$0xf] %v2113
        %2370 = vst [vmem:[%s236 + $0x9c] sm:$0xf] %v2114
        %2371 = vst [vmem:[%s236 + $0xa0] sm:$0xf] %v2115
        %2372 = vst [vmem:[%s236 + $0xa4] sm:$0xf] %v2116
        %2373 = vst [vmem:[%s236 + $0xa8] sm:$0xf] %v2117
        %2374 = vst [vmem:[%s236 + $0xac] sm:$0xf] %v2118
        %2375 = vst [vmem:[%s236 + $0xb0] sm:$0xf] %v2119
        %2376 = vst [vmem:[%s236 + $0xb4] sm:$0xf] %v2120
        %2377 = vst [vmem:[%s236 + $0xb8] sm:$0xf] %v2121
        %2378 = vst [vmem:[%s236 + $0xbc] sm:$0xf] %v2122
        %2379 = vst [vmem:[%s236 + $0xc0] sm:$0xf] %v2123
        %2380 = vst [vmem:[%s236 + $0xc4] sm:$0xf] %v2124
        %2381 = vst [vmem:[%s236 + $0xc8] sm:$0xf] %v2125
        %2382 = vst [vmem:[%s236 + $0xcc] sm:$0xf] %v2126
        %2383 = vst [vmem:[%s236 + $0xd0] sm:$0xf] %v2127
        %2384 = vst [vmem:[%s236 + $0xd4] sm:$0xf] %v2128
        %2385 = vst [vmem:[%s236 + $0xd8] sm:$0xf] %v2129
        %2386 = vst [vmem:[%s236 + $0xdc] sm:$0xf] %v2130
        %2387 = vst [vmem:[%s236 + $0xe0] sm:$0xf] %v2131
        %2388 = vst [vmem:[%s236 + $0xe4] sm:$0xf] %v2132
        %2389 = vst [vmem:[%s236 + $0xe8] sm:$0xf] %v2133
        %2390 = vst [vmem:[%s236 + $0xec] sm:$0xf] %v2134
        %2391 = vst [vmem:[%s236 + $0xf0] sm:$0xf] %v2135
        %2392 = vst [vmem:[%s236 + $0xf4] sm:$0xf] %v2136
        %2393 = vst [vmem:[%s236 + $0xf8] sm:$0xf] %v2137
        %2394 = vst [vmem:[%s236 + $0xfc] sm:$0xf] %v2138
        %2395 = vst [vmem:[%s236 + $0x100] sm:$0xf] %v2139
        %2396 = vst [vmem:[%s236 + $0x104] sm:$0xf] %v2140
        %2397 = vst [vmem:[%s236 + $0x108] sm:$0xf] %v2141
        %2398 = vst [vmem:[%s236 + $0x10c] sm:$0xf] %v2142
        %2399 = vst [vmem:[%s236 + $0x110] sm:$0xf] %v2143
        %2400 = vst [vmem:[%s236 + $0x114] sm:$0xf] %v2144
        %2401 = vst [vmem:[%s236 + $0x118] sm:$0xf] %v2145
        %2402 = vst [vmem:[%s236 + $0x11c] sm:$0xf] %v2146
        %2403 = vst [vmem:[%s236 + $0x120] sm:$0xf] %v2147
        %2404 = vst [vmem:[%s236 + $0x124] sm:$0xf] %v2148
        %2405 = vst [vmem:[%s236 + $0x128] sm:$0xf] %v2149
        %2406 = vst [vmem:[%s236 + $0x12c] sm:$0xf] %v2150
        %2407 = vst [vmem:[%s236 + $0x130] sm:$0xf] %v2151
        %2408 = vst [vmem:[%s236 + $0x134] sm:$0xf] %v2152
        %2409 = vst [vmem:[%s236 + $0x138] sm:$0xf] %v2153
        %2410 = vst [vmem:[%s236 + $0x13c] sm:$0xf] %v2154
        %2411 = vst [vmem:[%s236 + $0x140] sm:$0xf] %v2155
        %2412 = vst [vmem:[%s236 + $0x144] sm:$0xf] %v2156
        %2413 = vst [vmem:[%s236 + $0x148] sm:$0xf] %v2157
        %2414 = vst [vmem:[%s236 + $0x14c] sm:$0xf] %v2158
        %2415 = vst [vmem:[%s236 + $0x150] sm:$0xf] %v2159
        %2416 = vst [vmem:[%s236 + $0x154] sm:$0xf] %v2160
        %2417 = vst [vmem:[%s236 + $0x158] sm:$0xf] %v2161
        %2418 = vst [vmem:[%s236 + $0x15c] sm:$0xf] %v2162
        %2419 = vst [vmem:[%s236 + $0x160] sm:$0xf] %v2163
        %2420 = vst [vmem:[%s236 + $0x164] sm:$0xf] %v2164
        %2421 = vst [vmem:[%s236 + $0x168] sm:$0xf] %v2165
        %2422 = vst [vmem:[%s236 + $0x16c] sm:$0xf] %v2166
        %2423 = vst [vmem:[%s236 + $0x170] sm:$0xf] %v2167
        %2424 = vst [vmem:[%s236 + $0x174] sm:$0xf] %v2168
        %2425 = vst [vmem:[%s236 + $0x178] sm:$0xf] %v2169
        %2426 = vst [vmem:[%s236 + $0x17c] sm:$0xf] %v2170
        %2427 = vst [vmem:[%s236 + $0x180] sm:$0xf] %v2171
        %2428 = vst [vmem:[%s236 + $0x184] sm:$0xf] %v2172
        %2429 = vst [vmem:[%s236 + $0x188] sm:$0xf] %v2173
        %2430 = vst [vmem:[%s236 + $0x18c] sm:$0xf] %v2174
        %2431 = vst [vmem:[%s236 + $0x190] sm:$0xf] %v2175
        %2432 = vst [vmem:[%s236 + $0x194] sm:$0xf] %v2176
        %2433 = vst [vmem:[%s236 + $0x198] sm:$0xf] %v2177
        %2434 = vst [vmem:[%s236 + $0x19c] sm:$0xf] %v2178
        %2435 = vst [vmem:[%s236 + $0x1a0] sm:$0xf] %v2179
        %2436 = vst [vmem:[%s236 + $0x1a4] sm:$0xf] %v2180
        %2437 = vst [vmem:[%s236 + $0x1a8] sm:$0xf] %v2181
        %2438 = vst [vmem:[%s236 + $0x1ac] sm:$0xf] %v2182
        %2439 = vst [vmem:[%s236 + $0x1b0] sm:$0xf] %v2183
        %2440 = vst [vmem:[%s236 + $0x1b4] sm:$0xf] %v2184
        %2441 = vst [vmem:[%s236 + $0x1b8] sm:$0xf] %v2185
        %2442 = vst [vmem:[%s236 + $0x1bc] sm:$0xf] %v2186
        %2443 = vst [vmem:[%s236 + $0x1c0] sm:$0xf] %v2187
        %2444 = vst [vmem:[%s236 + $0x1c4] sm:$0xf] %v2188
        %2445 = vst [vmem:[%s236 + $0x1c8] sm:$0xf] %v2189
        %2446 = vst [vmem:[%s236 + $0x1cc] sm:$0xf] %v2190
        %2447 = vst [vmem:[%s236 + $0x1d0] sm:$0xf] %v2191
        %2448 = vst [vmem:[%s236 + $0x1d4] sm:$0xf] %v2192
        %2449 = vst [vmem:[%s236 + $0x1d8] sm:$0xf] %v2193
        %2450 = vst [vmem:[%s236 + $0x1dc] sm:$0xf] %v2194
        %2451 = vst [vmem:[%s236 + $0x1e0] sm:$0xf] %v2195
        %2452 = vst [vmem:[%s236 + $0x1e4] sm:$0xf] %v2196
        %2453 = vst [vmem:[%s236 + $0x1e8] sm:$0xf] %v2197
        %2454 = vst [vmem:[%s236 + $0x1ec] sm:$0xf] %v2198
        %2455 = vst [vmem:[%s236 + $0x1f0] sm:$0xf] %v2199
        %2456 = vst [vmem:[%s236 + $0x1f4] sm:$0xf] %v2200
        %2457 = vst [vmem:[%s236 + $0x1f8] sm:$0xf] %v2201
        %2458 = vst [vmem:[%s236 + $0x1fc] sm:$0xf] %v2202
        %s2459 = sand.u32 %s121, 1
        %s2460 = scalar_lea.sflag [#allocation4], %s2459
        %s2461 = sand.u32 %s121, 1
        %s2462 = smul.addr %s2461, 512
        %s2463 = scalar_lea.vmem [#allocation7], %s2462
        // Predicated region
        $region41: #{tpu_custom_call.1} parent=31 // pred_check
          %p2464 = pneg %p131
        $region42: #{tpu_custom_call.1} parent=31 // pred_check_branch
          %2466 = sbr.rel (%p2464) target = $region44
        $region43: #{tpu_custom_call.1} parent=31 // pred_region
          %s2467 = smul.u32 128, %s25
          %s2469 = ssub.s32 8192, 8192
          %2470 = vsyncadd %s2460, %s2469
          %s2471 = sadd.s32 %s26, %s2467
          %s2472 = smul.addr %s2471, 64
          %s2473 = scalar_lea.hbm %s3, %s2472
          %s2474 = sshll.u32 %s2463, 4
          %s2475 = int_to_ptr.vmem [resolvable:$true] %s2474
          %2480 = dma.vmem_to_hbm [thread:$0]  %s2475, 8192, %s2473, %s2460, 64, 64, 4
        $region44: #{tpu_custom_call.1} parent=31 // pred_fallthru
          _
      $region32: #{tpu_custom_call.1} parent=5 // pred_fallthru
        _
      %p2481 = scmp.le.s32.totalorder 2, %s16
      // Predicated region
      $region45: #{tpu_custom_call.1} parent=5 // pred_check
        %p2482 = pneg %p2481
      $region46: #{tpu_custom_call.1} parent=5 // pred_check_branch
        %2484 = sbr.rel (%p2482) target = $region48
      $region47: #{tpu_custom_call.1} parent=5 // pred_region
        %s2485 = ssub.s32 %s16, 2
        // Predicated region
        $region49: #{tpu_custom_call.1} parent=47 // pred_check
          %p2486 = pneg %p137
        $region50: #{tpu_custom_call.1} parent=47 // pred_check_branch
          %2488 = sbr.rel (%p2486) target = $region52
        $region51: #{tpu_custom_call.1} parent=47 // pred_region
          %s2489 = sand.u32 %s122, 1
          %s2490 = scalar_lea.sflag [#allocation4], %s2489
          %s2491 = sand.u32 %s122, 1
          %s2492 = smul.addr %s2491, 512
          %s2493 = scalar_lea.vmem [#allocation7], %s2492
          %2494 = dma.done %s2490, 8192
        $region52: #{tpu_custom_call.1} parent=47 // pred_fallthru
          _
      $region48: #{tpu_custom_call.1} parent=5 // pred_fallthru
        _
    $region6: #{tpu_custom_call.1} parent=1 // loop_footer
      %s20 = sadd.s32 1, %s16
    $region7: #{tpu_custom_call.1} parent=1 // loop_footer_branch
      %15 = sbr.rel target = $region3
    $region8: #{tpu_custom_call.1} parent=1 // loop_exit
      _
    %2495 = vsyncpa [#allocation3], 1
    %s2496 = scalar_lea.sflag [#allocation3], 1
    %2497 = vsyncpa %s2496, 1
    %2498 = vsyncpa [#allocation6], 1
    %2499 = vsyncpa [#allocation4], 1
    %s2500 = scalar_lea.sflag [#allocation4], 1
    %2501 = vsyncpa %s2500, 1

</llo_original>
